<compile_context>
chip_gen: v7x
topology: tpu7x:2x2x1
jax: 0.10.0
libtpu: 0.0.40
codegen_flags: <defaults>
</compile_context>

<pallas_src>
import jax
import jax.numpy as jnp
from jax.experimental import pallas as pl
from jax.experimental.pallas import tpu as pltpu

EPS = 1e-5     # nn.BatchNorm2d default eps
SLOPE = 0.1    # nn.LeakyReLU(0.1)


def _leaky_relu(x):
    return jnp.where(x > 0, x, SLOPE * x)


# ---------------------------------------------------------------------------
# Kernel A: conv1 (3x3, pad=1, no bias) + per-row-tile partial BN1 statistics
# ---------------------------------------------------------------------------
def conv1_stats_kernel(x_ref, b_ref, raw_ref, stats_ref):
    # x_ref    : (TH+2, W*Ci)    f32  H-zero-padded input rows (lane-dense, (w,ci) folded)
    # b_ref    : (3, W*Ci, W*Co) bf16 banded conv1 weights (one band per ky)
    # raw_ref  : (TH, W*Co)      f32  conv1 output rows (pre-BN), lane-dense
    # stats_ref: (2, W*Co)       f32  per-(w,c) partial [sum, sum-of-squares]
    TH = raw_ref.shape[0]
    acc = jnp.dot(x_ref[0:TH, :].astype(jnp.bfloat16), b_ref[0],
                  preferred_element_type=jnp.float32)
    acc = acc + jnp.dot(x_ref[1:TH + 1, :].astype(jnp.bfloat16), b_ref[1],
                        preferred_element_type=jnp.float32)
    acc = acc + jnp.dot(x_ref[2:TH + 2, :].astype(jnp.bfloat16), b_ref[2],
                        preferred_element_type=jnp.float32)
    raw_ref[...] = acc
    stats_ref[0:1, :] = jnp.sum(acc, axis=0, keepdims=True)
    stats_ref[1:2, :] = jnp.sum(acc * acc, axis=0, keepdims=True)


# ---------------------------------------------------------------------------
# Kernel B: BN1 (folded affine) + LeakyReLU + conv2 + partial BN2 statistics
# ---------------------------------------------------------------------------
def bn_act_conv_stats_kernel(raw1_ref, scale_ref, shift_ref, b_ref,
                             raw2_ref, stats_ref):
    # raw1_ref : (TH+2, W*C)    f32  pre-BN conv1 rows for this tile + 1-row halo
    #                                (zero raw rows where the halo crosses the image boundary)
    # scale_ref: (1, W*C)       f32  gamma1 * rsqrt(var1+eps), tiled across W
    # shift_ref: (1, W*C)       f32  beta1 - mean1*scale1,     tiled across W
    # b_ref    : (3, W*C, W*C)  bf16 banded conv2 weights
    # raw2_ref : (TH, W*C)      f32  conv2 output rows (pre-BN), lane-dense
    # stats_ref: (2, W*C)       f32  per-(w,c) partial [sum, sum-of-squares]
    THp2 = raw1_ref.shape[0]
    TH = THp2 - 2

    # BN1 as a folded per-channel affine + LeakyReLU (f32 math).
    a = raw1_ref[...] * scale_ref[...] + shift_ref[...]
    a = _leaky_relu(a)

    # conv2's zero padding along H: the image-boundary halo rows must be exactly
    # zero *after* the affine (the wrapper's zero raw rows became LeakyReLU(shift)).
    # Padded-row index = t*TH + local row; boundary rows are 0 and H+1.
    t = pl.program_id(1)
    row = t * TH + jax.lax.broadcasted_iota(jnp.int32, (THp2, 1), 0)
    h_pad_max = pl.num_programs(1) * TH + 1
    a = jnp.where(jnp.logical_and(row > 0, row < h_pad_max), a, 0.0)

    acc = jnp.dot(a[0:TH, :].astype(jnp.bfloat16), b_ref[0],
                  preferred_element_type=jnp.float32)
    acc = acc + jnp.dot(a[1:TH + 1, :].astype(jnp.bfloat16), b_ref[1],
                        preferred_element_type=jnp.float32)
    acc = acc + jnp.dot(a[2:TH + 2, :].astype(jnp.bfloat16), b_ref[2],
                        preferred_element_type=jnp.float32)

    raw2_ref[...] = acc
    stats_ref[0:1, :] = jnp.sum(acc, axis=0, keepdims=True)
    stats_ref[1:2, :] = jnp.sum(acc * acc, axis=0, keepdims=True)


# ---------------------------------------------------------------------------
# Kernel C: BN2 (folded affine) + LeakyReLU on a lane-dense 2D slab
# ---------------------------------------------------------------------------
def bn_act_kernel(x_ref, scale_ref, shift_ref, o_ref):
    o_ref[...] = _leaky_relu(x_ref[...] * scale_ref[...] + shift_ref[...])


# ---------------------------------------------------------------------------
# Wrapper helpers
# ---------------------------------------------------------------------------
def _banded_weights(w_oihw, width):
    """Fold a 3x3 conv (zero padding along W) into 3 banded MXU matmuls (one per ky).

    B[ky, win*Ci + ci, wout*Co + co] = w[co, ci, ky, kx] with kx = win - wout + 1,
    zero outside the 3-wide band (=> W zero-padding for free).
    """
    Co, Ci, KH, KW = w_oihw.shape
    mats = []
    for ky in range(KH):
        b = jnp.zeros((width * Ci, width * Co), jnp.float32)
        for kx in range(KW):
            band = jnp.eye(width, width, k=1 - kx, dtype=jnp.float32)  # win = wout + kx - 1
            tap = jnp.transpose(w_oihw[:, :, ky, kx])                  # (Ci, Co)
            b = b + jnp.kron(band, tap)
        mats.append(b)
    return jnp.stack(mats, axis=0).astype(jnp.bfloat16)               # (3, W*Ci, W*Co)


def _bn_finalize(stats, gamma, beta, count, width):
    """Combine per-tile partial [sum, sumsq] (per (w, c) lane) into a folded BN affine."""
    co = gamma.shape[0]
    s = jnp.sum(stats.reshape(-1, 2, width, co), axis=(0, 2))          # (2, Co)
    mean = s[0] / count
    var = jnp.maximum(s[1] / count - mean * mean, 0.0)                 # biased (training) var
    scale = gamma * jax.lax.rsqrt(var + EPS)
    shift = beta - mean * scale
    return scale, shift


def _row_tiles(h):
    th = 8 if h % 8 == 0 else h
    return th, h // th


def _rows_tile(rows, cap=1024):
    if rows <= cap:
        return rows
    tr = cap - (cap % 8)
    while tr > 8 and rows % tr != 0:
        tr -= 8
    return tr if (tr >= 8 and rows % tr == 0) else rows


def _vmem_limit(*block_shapes_dtypes):
    total = 0
    for shape, dtype in block_shapes_dtypes:
        n = 1
        for d in shape:
            n *= d
        total += n * jnp.dtype(dtype).itemsize
    # double-buffered pipeline blocks + headroom for in-kernel values / internal scratch
    return int(min(112 * 2 ** 20, max(8 * 2 ** 20, 2 * total + 4 * 2 ** 20)))


# ---------------------------------------------------------------------------
# Wrapper
# ---------------------------------------------------------------------------
def unet_block(x_nchw, params):
    # Conv biases are unused in the kernels: a per-channel constant bias is
    # exactly cancelled by the batch-statistics BatchNorm that follows.
    w1, _b1, g1, be1, w2, _b2, g2, be2 = params
    N, Ci, H, W = x_nchw.shape
    Co = w1.shape[0]
    M = N * H * W
    WCi, WCo = W * Ci, W * Co
    rows = N * H
    TH, nT = _row_tiles(H)

    # ---- wrapper-side layout plumbing (lane-dense slabs only) ---------------
    # NCHW -> (N, H, W*Ci), zero-pad H by 1, restructure into non-overlapping row
    # tiles that carry their 1-row halo (so no overlapping BlockSpecs are needed).
    x_rows = jnp.transpose(x_nchw, (0, 2, 3, 1)).reshape(N, H, WCi)
    x_rows = jnp.pad(x_rows, ((0, 0), (1, 1), (0, 0)))
    x_tiles = jnp.stack([x_rows[:, t * TH:t * TH + TH + 2] for t in range(nT)],
                        axis=1)                                  # (N, nT, TH+2, W*Ci)

    # 3x3 taps folded into banded MXU weights (kx taps + W zero-padding in the band).
    b1 = _banded_weights(w1, W)                                  # (3, W*Ci, W*Co) bf16
    b2 = _banded_weights(w2, W)                                  # (3, W*Co, W*Co) bf16

    # ---- call A: conv1 + partial BN1 stats ----------------------------------
    vmem_a = _vmem_limit(((TH + 2, WCi), jnp.float32), ((3, WCi, WCo), jnp.bfloat16),
                         ((TH, WCo), jnp.float32), ((2, WCo), jnp.float32))
    raw1, stats1 = pl.pallas_call(
        conv1_stats_kernel,
        grid=(N, nT),
        in_specs=[
            pl.BlockSpec((None, None, TH + 2, WCi), lambda n, t: (n, t, 0, 0)),
            pl.BlockSpec((3, WCi, WCo), lambda n, t: (0, 0, 0)),
        ],
        out_specs=[
            pl.BlockSpec((TH, WCo), lambda n, t: (n * nT + t, 0)),
            pl.BlockSpec((None, 2, WCo), lambda n, t: (n * nT + t, 0, 0)),
        ],
        out_shape=[
            jax.ShapeDtypeStruct((rows, WCo), jnp.float32),
            jax.ShapeDtypeStruct((N * nT, 2, WCo), jnp.float32),
        ],
        compiler_params=pltpu.CompilerParams(
            dimension_semantics=("parallel", "parallel"),
            vmem_limit_bytes=vmem_a),
        cost_estimate=pl.CostEstimate(
            flops=2 * rows * 3 * WCi * WCo + 3 * M * Co,
            transcendentals=0,
            bytes_accessed=(N * nT * (TH + 2) * WCi * 4 + 3 * WCi * WCo * 2
                            + rows * WCo * 4 + N * nT * 2 * WCo * 4)),
    )(x_tiles, b1)

    scale1, shift1 = _bn_finalize(stats1, g1, be1, M, W)
    scale1_t = jnp.tile(scale1, W).reshape(1, WCo)
    shift1_t = jnp.tile(shift1, W).reshape(1, WCo)

    # Restructure raw1 into 1-row-halo row tiles (zero rows at the image boundary).
    raw1_rows = jnp.pad(raw1.reshape(N, H, WCo), ((0, 0), (1, 1), (0, 0)))
    raw1_tiles = jnp.stack([raw1_rows[:, t * TH:t * TH + TH + 2] for t in range(nT)],
                           axis=1)                               # (N, nT, TH+2, W*Co)

    # ---- call B: BN1 affine + LeakyReLU + conv2 + partial BN2 stats ---------
    vmem_b = _vmem_limit(((TH + 2, WCo), jnp.float32), ((1, WCo), jnp.float32),
                         ((1, WCo), jnp.float32), ((3, WCo, WCo), jnp.bfloat16),
                         ((TH, WCo), jnp.float32), ((2, WCo), jnp.float32))
    raw2, stats2 = pl.pallas_call(
        bn_act_conv_stats_kernel,
        grid=(N, nT),
        in_specs=[
            pl.BlockSpec((None, None, TH + 2, WCo), lambda n, t: (n, t, 0, 0)),
            pl.BlockSpec((1, WCo), lambda n, t: (0, 0)),
            pl.BlockSpec((1, WCo), lambda n, t: (0, 0)),
            pl.BlockSpec((3, WCo, WCo), lambda n, t: (0, 0, 0)),
        ],
        out_specs=[
            pl.BlockSpec((TH, WCo), lambda n, t: (n * nT + t, 0)),
            pl.BlockSpec((None, 2, WCo), lambda n, t: (n * nT + t, 0, 0)),
        ],
        out_shape=[
            jax.ShapeDtypeStruct((rows, WCo), jnp.float32),
            jax.ShapeDtypeStruct((N * nT, 2, WCo), jnp.float32),
        ],
        compiler_params=pltpu.CompilerParams(
            dimension_semantics=("parallel", "parallel"),
            vmem_limit_bytes=vmem_b),
        cost_estimate=pl.CostEstimate(
            flops=2 * rows * 3 * WCo * WCo + 7 * M * Co,
            transcendentals=0,
            bytes_accessed=(N * nT * (TH + 2) * WCo * 4 + 3 * WCo * WCo * 2
                            + rows * WCo * 4 + N * nT * 2 * WCo * 4)),
    )(raw1_tiles, scale1_t, shift1_t, b2)

    scale2, shift2 = _bn_finalize(stats2, g2, be2, M, W)
    scale2_t = jnp.tile(scale2, W).reshape(1, WCo)
    shift2_t = jnp.tile(shift2, W).reshape(1, WCo)

    # ---- call C: BN2 affine + LeakyReLU on the lane-dense (N*H, W*Co) slab ---
    TR = _rows_tile(rows)
    vmem_c = _vmem_limit(((TR, WCo), jnp.float32), ((1, WCo), jnp.float32),
                         ((1, WCo), jnp.float32), ((TR, WCo), jnp.float32))
    y2d = pl.pallas_call(
        bn_act_kernel,
        grid=(rows // TR,),
        in_specs=[
            pl.BlockSpec((TR, WCo), lambda i: (i, 0)),
            pl.BlockSpec((1, WCo), lambda i: (0, 0)),
            pl.BlockSpec((1, WCo), lambda i: (0, 0)),
        ],
        out_specs=pl.BlockSpec((TR, WCo), lambda i: (i, 0)),
        out_shape=jax.ShapeDtypeStruct((rows, WCo), jnp.float32),
        compiler_params=pltpu.CompilerParams(
            dimension_semantics=("parallel",),
            vmem_limit_bytes=vmem_c),
        cost_estimate=pl.CostEstimate(
            flops=3 * M * Co,
            transcendentals=0,
            bytes_accessed=2 * rows * WCo * 4 + 2 * WCo * 4),
    )(raw2, scale2_t, shift2_t)

    return jnp.transpose(y2d.reshape(N, H, W, Co), (0, 3, 1, 2))


# ---------------------------------------------------------------------------
# Pure-JAX reference (conv_dtype=bfloat16 reproduces the kernel's precision
# policy: bf16 MXU operands with f32 accumulation; BN/activation in f32)
# ---------------------------------------------------------------------------
def unet_block_ref(x, params, conv_dtype=jnp.float32):
    w1, b1, g1, be1, w2, b2, g2, be2 = params

    def conv(h, w, b):
        y = jax.lax.conv_general_dilated(
            h.astype(conv_dtype), w.astype(conv_dtype),
            window_strides=(1, 1), padding=((1, 1), (1, 1)),
            dimension_numbers=("NCHW", "OIHW", "NCHW"),
            preferred_element_type=jnp.float32)
        return y + b[None, :, None, None]

    def bn_lrelu(h, g, bta):
        mean = jnp.mean(h, axis=(0, 2, 3), keepdims=True)
        var = jnp.mean((h - mean) ** 2, axis=(0, 2, 3), keepdims=True)
        y = (h - mean) * jax.lax.rsqrt(var + EPS) * g[None, :, None, None] \
            + bta[None, :, None, None]
        return jnp.where(y > 0, y, SLOPE * y)

    h = bn_lrelu(conv(x, w1, b1), g1, be1)
    return bn_lrelu(conv(h, w2, b2), g2, be2)


# ---------------------------------------------------------------------------
def make_params(key, in_channels, out_channels):
    ks = jax.random.split(key, 6)
    w1 = 0.1 * jax.random.normal(ks[0], (out_channels, in_channels, 3, 3), jnp.float32)
    b1 = 0.05 * jax.random.normal(ks[1], (out_channels,), jnp.float32)
    g1 = 1.0 + 0.1 * jax.random.normal(ks[2], (out_channels,), jnp.float32)
    be1 = 0.05 * jax.random.normal(ks[3], (out_channels,), jnp.float32)
    w2 = 0.1 * jax.random.normal(ks[4], (out_channels, out_channels, 3, 3), jnp.float32)
    b2 = 0.05 * jax.random.normal(ks[5], (out_channels,), jnp.float32)
    g2 = jnp.ones((out_channels,), jnp.float32)
    be2 = jnp.zeros((out_channels,), jnp.float32)
    return (w1, b1, g1, be1, w2, b2, g2, be2)


if __name__ == "__main__":
    key = jax.random.PRNGKey(0)
    k_x, k_p = jax.random.split(key)

    N, Cin, Cout, H, W = 2, 4, 8, 16, 16
    x = jax.random.normal(k_x, (N, Cin, H, W), jnp.float32)
    params = make_params(k_p, Cin, Cout)

    out = jax.block_until_ready(jax.jit(unet_block)(x, params))
    assert out.shape == (N, Cout, H, W), out.shape

    # Primary correctness check: reference with the same mixed-precision policy
    # (bf16 conv operands, f32 accumulation) -> tight tolerance.
    ref_bf16 = unet_block_ref(x, params, conv_dtype=jnp.bfloat16)
    err_matched = float(jnp.max(jnp.abs(out - ref_bf16)))
    assert err_matched < 5e-3, f"matched-precision max abs error {err_matched}"

    # Sanity check vs. the full-f32 reference (bf16 MXU operands cost ~1e-2
    # after two BatchNorms rescale the activations).
    ref_f32 = unet_block_ref(x, params, conv_dtype=jnp.float32)
    err_f32 = float(jnp.max(jnp.abs(out - ref_f32)))
    assert err_f32 < 1e-1, f"f32-reference max abs error {err_f32}"

    print("KERNEL_OK")
</pallas_src>

<mosaic_0001>
module attributes {stable_mosaic.version = 11 : i64} {
  func.func @conv1_stats_kernel(%arg0: i32, %arg1: i32, %arg2: memref<1x1x10x64xf32, #tpu.memory_space<vmem>>, %arg3: memref<3x64x128xbf16, #tpu.memory_space<vmem>>, %arg4: memref<8x128xf32, #tpu.memory_space<vmem>>, %arg5: memref<1x2x128xf32, #tpu.memory_space<vmem>>) attributes {dimension_semantics = [#tpu.dimension_semantics<parallel>, #tpu.dimension_semantics<parallel>], iteration_bounds = array<i64: 2, 2>, scalar_prefetch = 0 : i64, scratch_operands = 0 : i64, tpu.core_type = #tpu.core_type<tc>, window_params = [{transform_indices = @transform_0, window_bounds = array<i64: 1, 1, 10, 64>}, {pipeline_mode = #tpu.pipeline_mode<synchronous>, transform_indices = @transform_1, window_bounds = array<i64: 3, 64, 128>}, {transform_indices = @transform_2, window_bounds = array<i64: 8, 128>}, {transform_indices = @transform_3, window_bounds = array<i64: 1, 2, 128>}]} {
    %c0 = arith.constant 0 : index
    %c0_0 = arith.constant 0 : index
    %c0_1 = arith.constant 0 : index
    %c0_2 = arith.constant 0 : index
    %0 = vector.load %arg2[%c0, %c0_0, %c0_1, %c0_2] : memref<1x1x10x64xf32, #tpu.memory_space<vmem>>, vector<1x1x8x64xf32>
    %1 = vector.shape_cast %0 : vector<1x1x8x64xf32> to vector<8x64xf32>
    %2 = arith.truncf %1 : vector<8x64xf32> to vector<8x64xbf16>
    %c0_3 = arith.constant 0 : index
    %c0_4 = arith.constant 0 : index
    %c0_5 = arith.constant 0 : index
    %3 = vector.load %arg3[%c0_3, %c0_4, %c0_5] : memref<3x64x128xbf16, #tpu.memory_space<vmem>>, vector<1x64x128xbf16>
    %4 = vector.shape_cast %3 : vector<1x64x128xbf16> to vector<64x128xbf16>
    %cst = arith.constant dense<0.000000e+00> : vector<8x128xf32>
    %5 = tpu.matmul %2, %4, %cst {dimension_numbers = #tpu.dot_dimension_numbers<[1], [0], [0], [1], [0, 0, 1, 1], [], []>} : vector<8x64xbf16>, vector<64x128xbf16>, vector<8x128xf32> -> vector<8x128xf32>
    %c0_6 = arith.constant 0 : index
    %c0_7 = arith.constant 0 : index
    %c1 = arith.constant 1 : index
    %c0_8 = arith.constant 0 : index
    %6 = vector.load %arg2[%c0_6, %c0_7, %c1, %c0_8] : memref<1x1x10x64xf32, #tpu.memory_space<vmem>>, vector<1x1x8x64xf32>
    %7 = vector.shape_cast %6 : vector<1x1x8x64xf32> to vector<8x64xf32>
    %8 = arith.truncf %7 : vector<8x64xf32> to vector<8x64xbf16>
    %c1_9 = arith.constant 1 : index
    %c0_10 = arith.constant 0 : index
    %c0_11 = arith.constant 0 : index
    %9 = vector.load %arg3[%c1_9, %c0_10, %c0_11] : memref<3x64x128xbf16, #tpu.memory_space<vmem>>, vector<1x64x128xbf16>
    %10 = vector.shape_cast %9 : vector<1x64x128xbf16> to vector<64x128xbf16>
    %cst_12 = arith.constant dense<0.000000e+00> : vector<8x128xf32>
    %11 = tpu.matmul %8, %10, %cst_12 {dimension_numbers = #tpu.dot_dimension_numbers<[1], [0], [0], [1], [0, 0, 1, 1], [], []>} : vector<8x64xbf16>, vector<64x128xbf16>, vector<8x128xf32> -> vector<8x128xf32>
    %12 = arith.addf %5, %11 : vector<8x128xf32>
    %c0_13 = arith.constant 0 : index
    %c0_14 = arith.constant 0 : index
    %c2 = arith.constant 2 : index
    %c0_15 = arith.constant 0 : index
    %13 = vector.load %arg2[%c0_13, %c0_14, %c2, %c0_15] : memref<1x1x10x64xf32, #tpu.memory_space<vmem>>, vector<1x1x8x64xf32>
    %14 = vector.shape_cast %13 : vector<1x1x8x64xf32> to vector<8x64xf32>
    %15 = arith.truncf %14 : vector<8x64xf32> to vector<8x64xbf16>
    %c2_16 = arith.constant 2 : index
    %c0_17 = arith.constant 0 : index
    %c0_18 = arith.constant 0 : index
    %16 = vector.load %arg3[%c2_16, %c0_17, %c0_18] : memref<3x64x128xbf16, #tpu.memory_space<vmem>>, vector<1x64x128xbf16>
    %17 = vector.shape_cast %16 : vector<1x64x128xbf16> to vector<64x128xbf16>
    %cst_19 = arith.constant dense<0.000000e+00> : vector<8x128xf32>
    %18 = tpu.matmul %15, %17, %cst_19 {dimension_numbers = #tpu.dot_dimension_numbers<[1], [0], [0], [1], [0, 0, 1, 1], [], []>} : vector<8x64xbf16>, vector<64x128xbf16>, vector<8x128xf32> -> vector<8x128xf32>
    %19 = arith.addf %12, %18 : vector<8x128xf32>
    %c0_20 = arith.constant 0 : index
    %c0_21 = arith.constant 0 : index
    %20 = vector.load %arg4[%c0_20, %c0_21] : memref<8x128xf32, #tpu.memory_space<vmem>>, vector<8x128xf32>
    tpu.vector_store %arg4[%c0_20, %c0_21], %19 {strides = array<i32>} : memref<8x128xf32, #tpu.memory_space<vmem>>, vector<8x128xf32>,
    %cst_22 = arith.constant dense<0.000000e+00> : vector<128xf32>
    %21 = vector.multi_reduction <add>, %19, %cst_22 [0] : vector<8x128xf32> to vector<128xf32>
    %22 = vector.shape_cast %21 : vector<128xf32> to vector<1x128xf32>
    %c0_23 = arith.constant 0 : index
    %c0_24 = arith.constant 0 : index
    %c0_25 = arith.constant 0 : index
    %23 = vector.load %arg5[%c0_23, %c0_24, %c0_25] : memref<1x2x128xf32, #tpu.memory_space<vmem>>, vector<1x1x128xf32>
    %24 = vector.shape_cast %23 : vector<1x1x128xf32> to vector<1x128xf32>
    %25 = vector.shape_cast %22 : vector<1x128xf32> to vector<1x1x128xf32>
    tpu.vector_store %arg5[%c0_23, %c0_24, %c0_25], %25 {strides = array<i32>} : memref<1x2x128xf32, #tpu.memory_space<vmem>>, vector<1x1x128xf32>,
    %26 = arith.mulf %19, %19 : vector<8x128xf32>
    %cst_26 = arith.constant dense<0.000000e+00> : vector<128xf32>
    %27 = vector.multi_reduction <add>, %26, %cst_26 [0] : vector<8x128xf32> to vector<128xf32>
    %28 = vector.shape_cast %27 : vector<128xf32> to vector<1x128xf32>
    %c0_27 = arith.constant 0 : index
    %c1_28 = arith.constant 1 : index
    %c0_29 = arith.constant 0 : index
    %29 = vector.load %arg5[%c0_27, %c1_28, %c0_29] : memref<1x2x128xf32, #tpu.memory_space<vmem>>, vector<1x1x128xf32>
    %30 = vector.shape_cast %29 : vector<1x1x128xf32> to vector<1x128xf32>
    %31 = vector.shape_cast %28 : vector<1x128xf32> to vector<1x1x128xf32>
    tpu.vector_store %arg5[%c0_27, %c1_28, %c0_29], %31 {strides = array<i32>} : memref<1x2x128xf32, #tpu.memory_space<vmem>>, vector<1x1x128xf32>,
    return
  }
  func.func @transform_0(%arg0: i32, %arg1: i32) -> (i32, i32, i32, i32) {
    %c0_i32 = arith.constant 0 : i32
    %c0_i32_0 = arith.constant 0 : i32
    %c0_i32_1 = arith.constant 0 : i32
    return %arg0, %arg1, %c0_i32, %c0_i32_0 : i32, i32, i32, i32
  }
  func.func @transform_1(%arg0: i32, %arg1: i32) -> (i32, i32, i32) {
    %c0_i32 = arith.constant 0 : i32
    %c0_i32_0 = arith.constant 0 : i32
    %c0_i32_1 = arith.constant 0 : i32
    %c0_i32_2 = arith.constant 0 : i32
    return %c0_i32, %c0_i32_0, %c0_i32_1 : i32, i32, i32
  }
  func.func @transform_2(%arg0: i32, %arg1: i32) -> (i32, i32) {
    %c2_i32 = arith.constant 2 : i32
    %0 = arith.muli %arg0, %c2_i32 : i32
    %1 = arith.addi %0, %arg1 : i32
    %c0_i32 = arith.constant 0 : i32
    %c0_i32_0 = arith.constant 0 : i32
    return %1, %c0_i32 : i32, i32
  }
  func.func @transform_3(%arg0: i32, %arg1: i32) -> (i32, i32, i32) {
    %c2_i32 = arith.constant 2 : i32
    %0 = arith.muli %arg0, %c2_i32 : i32
    %1 = arith.addi %0, %arg1 : i32
    %c0_i32 = arith.constant 0 : i32
    %c0_i32_0 = arith.constant 0 : i32
    %c0_i32_1 = arith.constant 0 : i32
    return %1, %c0_i32, %c0_i32_0 : i32, i32, i32
  }
}

module attributes {stable_mosaic.version = 11 : i64} {
  func.func @bn_act_conv_stats_kernel(%arg0: i32, %arg1: i32, %arg2: memref<1x1x10x128xf32, #tpu.memory_space<vmem>>, %arg3: memref<1x128xf32, #tpu.memory_space<vmem>>, %arg4: memref<1x128xf32, #tpu.memory_space<vmem>>, %arg5: memref<3x128x128xbf16, #tpu.memory_space<vmem>>, %arg6: memref<8x128xf32, #tpu.memory_space<vmem>>, %arg7: memref<1x2x128xf32, #tpu.memory_space<vmem>>) attributes {dimension_semantics = [#tpu.dimension_semantics<parallel>, #tpu.dimension_semantics<parallel>], iteration_bounds = array<i64: 2, 2>, scalar_prefetch = 0 : i64, scratch_operands = 0 : i64, tpu.core_type = #tpu.core_type<tc>, window_params = [{transform_indices = @transform_0, window_bounds = array<i64: 1, 1, 10, 128>}, {pipeline_mode = #tpu.pipeline_mode<synchronous>, transform_indices = @transform_1, window_bounds = array<i64: 1, 128>}, {pipeline_mode = #tpu.pipeline_mode<synchronous>, transform_indices = @transform_2, window_bounds = array<i64: 1, 128>}, {pipeline_mode = #tpu.pipeline_mode<synchronous>, transform_indices = @transform_3, window_bounds = array<i64: 3, 128, 128>}, {transform_indices = @transform_4, window_bounds = array<i64: 8, 128>}, {transform_indices = @transform_5, window_bounds = array<i64: 1, 2, 128>}]} {
    %c0 = arith.constant 0 : index
    %c0_0 = arith.constant 0 : index
    %c0_1 = arith.constant 0 : index
    %c0_2 = arith.constant 0 : index
    %0 = vector.load %arg2[%c0, %c0_0, %c0_1, %c0_2] : memref<1x1x10x128xf32, #tpu.memory_space<vmem>>, vector<1x1x10x128xf32>
    %1 = vector.shape_cast %0 : vector<1x1x10x128xf32> to vector<10x128xf32>
    %c0_3 = arith.constant 0 : index
    %c0_4 = arith.constant 0 : index
    %2 = vector.load %arg3[%c0_3, %c0_4] : memref<1x128xf32, #tpu.memory_space<vmem>>, vector<1x128xf32>
    %3 = vector.broadcast %2 : vector<1x128xf32> to vector<10x128xf32>
    %4 = arith.mulf %1, %3 : vector<10x128xf32>
    %c0_5 = arith.constant 0 : index
    %c0_6 = arith.constant 0 : index
    %5 = vector.load %arg4[%c0_5, %c0_6] : memref<1x128xf32, #tpu.memory_space<vmem>>, vector<1x128xf32>
    %6 = vector.broadcast %5 : vector<1x128xf32> to vector<10x128xf32>
    %7 = arith.addf %4, %6 : vector<10x128xf32>
    %cst = arith.constant 0.000000e+00 : f32
    %8 = vector.broadcast %cst : f32 to vector<10x128xf32>
    %9 = arith.cmpf ogt, %7, %8 : vector<10x128xf32>
    %cst_7 = arith.constant 1.000000e-01 : f32
    %10 = vector.broadcast %cst_7 : f32 to vector<10x128xf32>
    %11 = arith.mulf %10, %7 : vector<10x128xf32>
    %12 = arith.select %9, %7, %11 : vector<10x128xi1>, vector<10x128xf32>
    %c8_i32 = arith.constant 8 : i32
    %13 = arith.muli %arg1, %c8_i32 : i32
    %14 = tpu.iota {dimensions = array<i32: 0>} : vector<10x1xi32>
    %15 = vector.broadcast %13 : i32 to vector<10x1xi32>
    %16 = arith.addi %15, %14 : vector<10x1xi32>
    %c0_i32 = arith.constant 0 : i32
    %17 = vector.broadcast %c0_i32 : i32 to vector<10x1xi32>
    %18 = arith.cmpi sgt, %16, %17 : vector<10x1xi32>
    %c17_i32 = arith.constant 17 : i32
    %19 = vector.broadcast %c17_i32 : i32 to vector<10x1xi32>
    %20 = arith.cmpi slt, %16, %19 : vector<10x1xi32>
    %21 = arith.andi %18, %20 : vector<10x1xi1>
    %cst_8 = arith.constant 0.000000e+00 : f32
    %22 = vector.shape_cast %21 : vector<10x1xi1> to vector<10x1xi1>
    %23 = vector.broadcast %22 : vector<10x1xi1> to vector<10x128xi1>
    %24 = vector.broadcast %cst_8 : f32 to vector<10x128xf32>
    %25 = arith.select %23, %12, %24 : vector<10x128xi1>, vector<10x128xf32>
    %26 = vector.extract_strided_slice %25 {offsets = [0, 0], sizes = [8, 128], strides = [1, 1]} : vector<10x128xf32> to vector<8x128xf32>
    %27 = arith.truncf %26 : vector<8x128xf32> to vector<8x128xbf16>
    %c0_9 = arith.constant 0 : index
    %c0_10 = arith.constant 0 : index
    %c0_11 = arith.constant 0 : index
    %28 = vector.load %arg5[%c0_9, %c0_10, %c0_11] : memref<3x128x128xbf16, #tpu.memory_space<vmem>>, vector<1x128x128xbf16>
    %29 = vector.shape_cast %28 : vector<1x128x128xbf16> to vector<128x128xbf16>
    %cst_12 = arith.constant dense<0.000000e+00> : vector<8x128xf32>
    %30 = tpu.matmul %27, %29, %cst_12 {dimension_numbers = #tpu.dot_dimension_numbers<[1], [0], [0], [1], [0, 0, 1, 1], [], []>} : vector<8x128xbf16>, vector<128x128xbf16>, vector<8x128xf32> -> vector<8x128xf32>
    %31 = vector.extract_strided_slice %25 {offsets = [1, 0], sizes = [8, 128], strides = [1, 1]} : vector<10x128xf32> to vector<8x128xf32>
    %32 = arith.truncf %31 : vector<8x128xf32> to vector<8x128xbf16>
    %c1 = arith.constant 1 : index
    %c0_13 = arith.constant 0 : index
    %c0_14 = arith.constant 0 : index
    %33 = vector.load %arg5[%c1, %c0_13, %c0_14] : memref<3x128x128xbf16, #tpu.memory_space<vmem>>, vector<1x128x128xbf16>
    %34 = vector.shape_cast %33 : vector<1x128x128xbf16> to vector<128x128xbf16>
    %cst_15 = arith.constant dense<0.000000e+00> : vector<8x128xf32>
    %35 = tpu.matmul %32, %34, %cst_15 {dimension_numbers = #tpu.dot_dimension_numbers<[1], [0], [0], [1], [0, 0, 1, 1], [], []>} : vector<8x128xbf16>, vector<128x128xbf16>, vector<8x128xf32> -> vector<8x128xf32>
    %36 = arith.addf %30, %35 : vector<8x128xf32>
    %37 = vector.extract_strided_slice %25 {offsets = [2, 0], sizes = [8, 128], strides = [1, 1]} : vector<10x128xf32> to vector<8x128xf32>
    %38 = arith.truncf %37 : vector<8x128xf32> to vector<8x128xbf16>
    %c2 = arith.constant 2 : index
    %c0_16 = arith.constant 0 : index
    %c0_17 = arith.constant 0 : index
    %39 = vector.load %arg5[%c2, %c0_16, %c0_17] : memref<3x128x128xbf16, #tpu.memory_space<vmem>>, vector<1x128x128xbf16>
    %40 = vector.shape_cast %39 : vector<1x128x128xbf16> to vector<128x128xbf16>
    %cst_18 = arith.constant dense<0.000000e+00> : vector<8x128xf32>
    %41 = tpu.matmul %38, %40, %cst_18 {dimension_numbers = #tpu.dot_dimension_numbers<[1], [0], [0], [1], [0, 0, 1, 1], [], []>} : vector<8x128xbf16>, vector<128x128xbf16>, vector<8x128xf32> -> vector<8x128xf32>
    %42 = arith.addf %36, %41 : vector<8x128xf32>
    %c0_19 = arith.constant 0 : index
    %c0_20 = arith.constant 0 : index
    %43 = vector.load %arg6[%c0_19, %c0_20] : memref<8x128xf32, #tpu.memory_space<vmem>>, vector<8x128xf32>
    tpu.vector_store %arg6[%c0_19, %c0_20], %42 {strides = array<i32>} : memref<8x128xf32, #tpu.memory_space<vmem>>, vector<8x128xf32>,
    %cst_21 = arith.constant dense<0.000000e+00> : vector<128xf32>
    %44 = vector.multi_reduction <add>, %42, %cst_21 [0] : vector<8x128xf32> to vector<128xf32>
    %45 = vector.shape_cast %44 : vector<128xf32> to vector<1x128xf32>
    %c0_22 = arith.constant 0 : index
    %c0_23 = arith.constant 0 : index
    %c0_24 = arith.constant 0 : index
    %46 = vector.load %arg7[%c0_22, %c0_23, %c0_24] : memref<1x2x128xf32, #tpu.memory_space<vmem>>, vector<1x1x128xf32>
    %47 = vector.shape_cast %46 : vector<1x1x128xf32> to vector<1x128xf32>
    %48 = vector.shape_cast %45 : vector<1x128xf32> to vector<1x1x128xf32>
    tpu.vector_store %arg7[%c0_22, %c0_23, %c0_24], %48 {strides = array<i32>} : memref<1x2x128xf32, #tpu.memory_space<vmem>>, vector<1x1x128xf32>,
    %49 = arith.mulf %42, %42 : vector<8x128xf32>
    %cst_25 = arith.constant dense<0.000000e+00> : vector<128xf32>
    %50 = vector.multi_reduction <add>, %49, %cst_25 [0] : vector<8x128xf32> to vector<128xf32>
    %51 = vector.shape_cast %50 : vector<128xf32> to vector<1x128xf32>
    %c0_26 = arith.constant 0 : index
    %c1_27 = arith.constant 1 : index
    %c0_28 = arith.constant 0 : index
    %52 = vector.load %arg7[%c0_26, %c1_27, %c0_28] : memref<1x2x128xf32, #tpu.memory_space<vmem>>, vector<1x1x128xf32>
    %53 = vector.shape_cast %52 : vector<1x1x128xf32> to vector<1x128xf32>
    %54 = vector.shape_cast %51 : vector<1x128xf32> to vector<1x1x128xf32>
    tpu.vector_store %arg7[%c0_26, %c1_27, %c0_28], %54 {strides = array<i32>} : memref<1x2x128xf32, #tpu.memory_space<vmem>>, vector<1x1x128xf32>,
    return
  }
  func.func @transform_0(%arg0: i32, %arg1: i32) -> (i32, i32, i32, i32) {
    %c0_i32 = arith.constant 0 : i32
    %c0_i32_0 = arith.constant 0 : i32
    %c0_i32_1 = arith.constant 0 : i32
    return %arg0, %arg1, %c0_i32, %c0_i32_0 : i32, i32, i32, i32
  }
  func.func @transform_1(%arg0: i32, %arg1: i32) -> (i32, i32) {
    %c0_i32 = arith.constant 0 : i32
    %c0_i32_0 = arith.constant 0 : i32
    %c0_i32_1 = arith.constant 0 : i32
    return %c0_i32, %c0_i32_0 : i32, i32
  }
  func.func @transform_2(%arg0: i32, %arg1: i32) -> (i32, i32) {
    %c0_i32 = arith.constant 0 : i32
    %c0_i32_0 = arith.constant 0 : i32
    %c0_i32_1 = arith.constant 0 : i32
    return %c0_i32, %c0_i32_0 : i32, i32
  }
  func.func @transform_3(%arg0: i32, %arg1: i32) -> (i32, i32, i32) {
    %c0_i32 = arith.constant 0 : i32
    %c0_i32_0 = arith.constant 0 : i32
    %c0_i32_1 = arith.constant 0 : i32
    %c0_i32_2 = arith.constant 0 : i32
    return %c0_i32, %c0_i32_0, %c0_i32_1 : i32, i32, i32
  }
  func.func @transform_4(%arg0: i32, %arg1: i32) -> (i32, i32) {
    %c2_i32 = arith.constant 2 : i32
    %0 = arith.muli %arg0, %c2_i32 : i32
    %1 = arith.addi %0, %arg1 : i32
    %c0_i32 = arith.constant 0 : i32
    %c0_i32_0 = arith.constant 0 : i32
    return %1, %c0_i32 : i32, i32
  }
  func.func @transform_5(%arg0: i32, %arg1: i32) -> (i32, i32, i32) {
    %c2_i32 = arith.constant 2 : i32
    %0 = arith.muli %arg0, %c2_i32 : i32
    %1 = arith.addi %0, %arg1 : i32
    %c0_i32 = arith.constant 0 : i32
    %c0_i32_0 = arith.constant 0 : i32
    %c0_i32_1 = arith.constant 0 : i32
    return %1, %c0_i32, %c0_i32_0 : i32, i32, i32
  }
}

module attributes {stable_mosaic.version = 11 : i64} {
  func.func @bn_act_kernel(%arg0: i32, %arg1: memref<32x128xf32, #tpu.memory_space<vmem>>, %arg2: memref<1x128xf32, #tpu.memory_space<vmem>>, %arg3: memref<1x128xf32, #tpu.memory_space<vmem>>, %arg4: memref<32x128xf32, #tpu.memory_space<vmem>>) attributes {dimension_semantics = [#tpu.dimension_semantics<parallel>], iteration_bounds = array<i64: 1>, scalar_prefetch = 0 : i64, scratch_operands = 0 : i64, tpu.core_type = #tpu.core_type<tc>, window_params = [{transform_indices = @transform_0, window_bounds = array<i64: 32, 128>}, {pipeline_mode = #tpu.pipeline_mode<synchronous>, transform_indices = @transform_1, window_bounds = array<i64: 1, 128>}, {pipeline_mode = #tpu.pipeline_mode<synchronous>, transform_indices = @transform_2, window_bounds = array<i64: 1, 128>}, {transform_indices = @transform_3, window_bounds = array<i64: 32, 128>}]} {
    %c0 = arith.constant 0 : index
    %c0_0 = arith.constant 0 : index
    %0 = vector.load %arg1[%c0, %c0_0] : memref<32x128xf32, #tpu.memory_space<vmem>>, vector<32x128xf32>
    %c0_1 = arith.constant 0 : index
    %c0_2 = arith.constant 0 : index
    %1 = vector.load %arg2[%c0_1, %c0_2] : memref<1x128xf32, #tpu.memory_space<vmem>>, vector<1x128xf32>
    %2 = vector.broadcast %1 : vector<1x128xf32> to vector<32x128xf32>
    %3 = arith.mulf %0, %2 : vector<32x128xf32>
    %c0_3 = arith.constant 0 : index
    %c0_4 = arith.constant 0 : index
    %4 = vector.load %arg3[%c0_3, %c0_4] : memref<1x128xf32, #tpu.memory_space<vmem>>, vector<1x128xf32>
    %5 = vector.broadcast %4 : vector<1x128xf32> to vector<32x128xf32>
    %6 = arith.addf %3, %5 : vector<32x128xf32>
    %cst = arith.constant 0.000000e+00 : f32
    %7 = vector.broadcast %cst : f32 to vector<32x128xf32>
    %8 = arith.cmpf ogt, %6, %7 : vector<32x128xf32>
    %cst_5 = arith.constant 1.000000e-01 : f32
    %9 = vector.broadcast %cst_5 : f32 to vector<32x128xf32>
    %10 = arith.mulf %9, %6 : vector<32x128xf32>
    %11 = arith.select %8, %6, %10 : vector<32x128xi1>, vector<32x128xf32>
    %c0_6 = arith.constant 0 : index
    %c0_7 = arith.constant 0 : index
    %12 = vector.load %arg4[%c0_6, %c0_7] : memref<32x128xf32, #tpu.memory_space<vmem>>, vector<32x128xf32>
    tpu.vector_store %arg4[%c0_6, %c0_7], %11 {strides = array<i32>} : memref<32x128xf32, #tpu.memory_space<vmem>>, vector<32x128xf32>,
    return
  }
  func.func @transform_0(%arg0: i32) -> (i32, i32) {
    %c0_i32 = arith.constant 0 : i32
    %c0_i32_0 = arith.constant 0 : i32
    return %arg0, %c0_i32 : i32, i32
  }
  func.func @transform_1(%arg0: i32) -> (i32, i32) {
    %c0_i32 = arith.constant 0 : i32
    %c0_i32_0 = arith.constant 0 : i32
    %c0_i32_1 = arith.constant 0 : i32
    return %c0_i32, %c0_i32_0 : i32, i32
  }
  func.func @transform_2(%arg0: i32) -> (i32, i32) {
    %c0_i32 = arith.constant 0 : i32
    %c0_i32_0 = arith.constant 0 : i32
    %c0_i32_1 = arith.constant 0 : i32
    return %c0_i32, %c0_i32_0 : i32, i32
  }
  func.func @transform_3(%arg0: i32) -> (i32, i32) {
    %c0_i32 = arith.constant 0 : i32
    %c0_i32_0 = arith.constant 0 : i32
    return %arg0, %c0_i32 : i32, i32
  }
}

</mosaic_0001>

<llo_original>
// kernel: tile.23
$region0: #{tile.23}
  #allocation0 [shape = 's32[1]{0}', space=sflag, size = 0x4, scoped, tag = 'scoped memory for tile.23']
  %s0 = inlined_call_operand.vmem [shape: f32[8], index: 0, kind: input, shape index: {}]
  %s1 = inlined_call_operand.vmem [shape: f32[16,8], index: 1, kind: output, shape index: {}]
  // Predicated region
  $region2: #{tile.23} parent=0 // pred_check
    _
  $region3: #{tile.23} parent=0 // pred_check_branch
    %3 = sbr.rel (0) target = $region5
  $region4: #{tile.23} parent=0 // pred_region
    _
  $region5: #{tile.23} parent=0 // pred_fallthru
    _
  %v4 = vld [vmem:[%s0] ss:$0 sm:$0xff]
  %5 = vst [vmem:[%s1] sm:$0xff] %v4
  %s6 = scalar_lea.vmem %s1, 8
  %7 = vst [vmem:[%s6] sm:$0xff] %v4

// kernel: tile.24
$region0: #{tile.24}
  %s0 = inlined_call_operand.vmem [shape: f32[16,8], index: 0, kind: input, shape index: {}]
  %s1 = inlined_call_operand.vmem [shape: f32[1,128], index: 1, kind: output, shape index: {}]
  $region1: #{tile.24} parent=0
    #allocation0 [shape = 'u8[4096]{0}', space=vmem, size = 0x1000, scoped, tag = 'scoped mem for output reshape']
    %v2 = vld [vmem:[%s0] sm:$0x1]
    %vm3 = vcmask 64512
    %4 = vst.msk [vmem:[#allocation0] sm:$0x1] %vm3, %v2
    %s5 = scalar_lea.vmem %s0, 15
    %v6 = vld [vmem:[%s5] sm:$0x1]
    %7 = vrot.lane.b32.xlu0 %v6, 120
    %v8 = vpop.permute.xlu0 %7
    %vm9 = vcmask 1048512
    %10 = vst.msk [vmem:[#allocation0] sm:$0x1] %vm9, %v8
    %s11 = scalar_lea.vmem %s0, 14
    %v12 = vld [vmem:[%s11] sm:$0x1]
    %13 = vrot.lane.b32.xlu0 %v12, 112
    %v14 = vpop.permute.xlu0 %13
    %vm15 = vcmask 982912
    %16 = vst.msk [vmem:[#allocation0] sm:$0x1] %vm15, %v14
    %s17 = scalar_lea.vmem %s0, 13
    %v18 = vld [vmem:[%s17] sm:$0x1]
    %19 = vrot.lane.b32.xlu0 %v18, 104
    %v20 = vpop.permute.xlu0 %19
    %vm21 = vcmask 917312
    %22 = vst.msk [vmem:[#allocation0] sm:$0x1] %vm21, %v20
    %s23 = scalar_lea.vmem %s0, 12
    %v24 = vld [vmem:[%s23] sm:$0x1]
    %25 = vrot.lane.b32.xlu0 %v24, 96
    %v26 = vpop.permute.xlu0 %25
    %vm27 = vcmask 851712
    %28 = vst.msk [vmem:[#allocation0] sm:$0x1] %vm27, %v26
    %s29 = scalar_lea.vmem %s0, 11
    %v30 = vld [vmem:[%s29] sm:$0x1]
    %31 = vrot.lane.b32.xlu0 %v30, 88
    %v32 = vpop.permute.xlu0 %31
    %vm33 = vcmask 786112
    %34 = vst.msk [vmem:[#allocation0] sm:$0x1] %vm33, %v32
    %s35 = scalar_lea.vmem %s0, 10
    %v36 = vld [vmem:[%s35] sm:$0x1]
    %37 = vrot.lane.b32.xlu0 %v36, 80
    %v38 = vpop.permute.xlu0 %37
    %vm39 = vcmask 720512
    %40 = vst.msk [vmem:[#allocation0] sm:$0x1] %vm39, %v38
    %s41 = scalar_lea.vmem %s0, 9
    %v42 = vld [vmem:[%s41] sm:$0x1]
    %43 = vrot.lane.b32.xlu0 %v42, 72
    %v44 = vpop.permute.xlu0 %43
    %vm45 = vcmask 654912
    %46 = vst.msk [vmem:[#allocation0] sm:$0x1] %vm45, %v44
    %s47 = scalar_lea.vmem %s0, 8
    %v48 = vld [vmem:[%s47] sm:$0x1]
    %49 = vrot.lane.b32.xlu0 %v48, 64
    %v50 = vpop.permute.xlu0 %49
    %vm51 = vcmask 589312
    %52 = vst.msk [vmem:[#allocation0] sm:$0x1] %vm51, %v50
    %s53 = scalar_lea.vmem %s0, 7
    %v54 = vld [vmem:[%s53] sm:$0x1]
    %55 = vrot.lane.b32.xlu0 %v54, 56
    %v56 = vpop.permute.xlu0 %55
    %vm57 = vcmask 523712
    %58 = vst.msk [vmem:[#allocation0] sm:$0x1] %vm57, %v56
    %s59 = scalar_lea.vmem %s0, 6
    %v60 = vld [vmem:[%s59] sm:$0x1]
    %61 = vrot.lane.b32.xlu0 %v60, 48
    %v62 = vpop.permute.xlu0 %61
    %vm63 = vcmask 458112
    %64 = vst.msk [vmem:[#allocation0] sm:$0x1] %vm63, %v62
    %s65 = scalar_lea.vmem %s0, 5
    %v66 = vld [vmem:[%s65] sm:$0x1]
    %67 = vrot.lane.b32.xlu0 %v66, 40
    %v68 = vpop.permute.xlu0 %67
    %vm69 = vcmask 392512
    %70 = vst.msk [vmem:[#allocation0] sm:$0x1] %vm69, %v68
    %s71 = scalar_lea.vmem %s0, 4
    %v72 = vld [vmem:[%s71] sm:$0x1]
    %73 = vrot.lane.b32.xlu0 %v72, 32
    %v74 = vpop.permute.xlu0 %73
    %vm75 = vcmask 326912
    %76 = vst.msk [vmem:[#allocation0] sm:$0x1] %vm75, %v74
    %s77 = scalar_lea.vmem %s0, 3
    %v78 = vld [vmem:[%s77] sm:$0x1]
    %79 = vrot.lane.b32.xlu0 %v78, 24
    %v80 = vpop.permute.xlu0 %79
    %vm81 = vcmask 261312
    %82 = vst.msk [vmem:[#allocation0] sm:$0x1] %vm81, %v80
    %s83 = scalar_lea.vmem %s0, 2
    %v84 = vld [vmem:[%s83] sm:$0x1]
    %85 = vrot.lane.b32.xlu0 %v84, 16
    %v86 = vpop.permute.xlu0 %85
    %vm87 = vcmask 195712
    %88 = vst.msk [vmem:[#allocation0] sm:$0x1] %vm87, %v86
    %s89 = scalar_lea.vmem %s0, 1
    %v90 = vld [vmem:[%s89] sm:$0x1]
    %91 = vrot.lane.b32.xlu0 %v90, 8
    %v92 = vpop.permute.xlu0 %91
    %vm93 = vcmask 130112
    %94 = vst.msk [vmem:[#allocation0] sm:$0x1] %vm93, %v92
    %s96 = sshllo.u32 0, 1
    %v98 = vld [vmem:[#allocation0] sm:%s96]
    %s99 = sshllo.u32 0, 1
    %100 = vst [vmem:[%s1] sm:%s99] %v98

// kernel: unet_block.3
$region0: #{unet_block.3}
  #allocation0 [shape = 'u32[]', space=smem, size = 0x4, offset = 0x4, fixed_abs, tag = 'smem constant byte address 0x4 - core index']
  #allocation1 [shape = 'u32[144,128]{1,0:T(1,128)}', space=vmem, size = 0x12000, scoped, tag = 'internal scratch']
  %s0 = inlined_call_operand.vmem [shape: f32[2,2,10,64], index: 0, kind: input, shape index: {}]
  %s1 = inlined_call_operand.vmem [shape: bf16[3,64,128], index: 1, kind: input, shape index: {}]
  %s2 = inlined_call_operand.vmem [shape: f32[32,128], index: 2, kind: output, shape index: {0}]
  %s3 = inlined_call_operand.vmem [shape: f32[4,2,128], index: 3, kind: output, shape index: {1}]
  %4 = xla_tuple %s2, %s3
  %s5 = sld [smem:[#allocation0]]
  $region49: #{unet_block.3} parent=0
    _
  %s7 = ssub.s32 1, %s5
  %s8 = scalar_select 0, %s7, %s5
  loop: start=0, step=1, limit=6
  $region2: #{unet_block.3} parent=0 // loop_pre_header
    _
  $region3: #{unet_block.3} parent=0 // loop_header
    %s10 = sphi 0, %s14
    %p11 = scmp.ge.s32.totalorder %s10, 6
    %s17 = sphi 0, %s29
    %s18 = sphi 0, %s25
    %s19 = sphi 0, %s17
    %s20 = sphi 0, %s18
    %s21 = sphi 0, %s19
    %s22 = sphi 0, %s20
    %s34 = sphi 0, %s36
    %s37 = sphi 0, %s34
    %s38 = sphi 0, %s37
    %s54 = sphi 0, %s38
    %s58 = sphi 0, %s58
    %s60 = sphi 0, %s58
    %s61 = sphi 0, %s60
    %s75 = sphi 0, %s61
    %s85 = sphi 0, %s87
    %s88 = sphi 0, %s85
    %s89 = sphi 0, %s88
    %s105 = sphi 0, %s89
    %s115 = sphi 0, %s117
    %s118 = sphi 0, %s115
    %s119 = sphi 0, %s118
    %s135 = sphi 0, %s119
  $region4: #{unet_block.3} parent=0 // loop_header_branch
    %13 = sbr.rel (%p11) target = $region8
  $region5: #{unet_block.3} parent=0 // loop_body
    %s15 = ssub.s32 %s10, 1
    %s16 = ssub.s32 %s10, 2
    %s23 = sadd.s32 1, %s18
    %p24 = scmp.ge.s32.totalorder %s23, 2
    %s25 = scalar_select %p24, 0, %s23
    %s26 = sadd.s32 1, %s17
    %s27 = scalar_select %p24, %s26, %s17
    %p28 = scmp.ge.s32.totalorder %s27, 2
    %s29 = scalar_select %p28, 0, %s27
    %s30 = ssub.s32 %s17, %s29
    %s31 = ssub.s32 %s18, %s25
    %s32 = sor.u32 %s30, %s31
    %p33 = scmp.eq.s32.totalorder %s32, 0
    %s35 = sadd.s32 %s34, 1
    %s36 = scalar_select %p33, %s34, %s35
    %p39 = pneg %p33
    %p40 = scmp.eq.s32.totalorder %s10, 3
    %p41 = por %p39, %p40
    %p42 = scmp.ne.s32.totalorder %s34, %s37
    %p43 = scmp.eq.s32.totalorder %s10, 0
    %p44 = por %p42, %p43
    %p45 = scmp.ne.s32.totalorder %s34, %s37
    %p46 = scmp.eq.s32.totalorder %s15, 3
    %p47 = por %p45, %p46
    %p48 = scmp.ne.s32.totalorder %s37, %s38
    %p49 = scmp.eq.s32.totalorder %s15, 0
    %p50 = por %p48, %p49
    %p51 = scmp.ne.s32.totalorder %s37, %s38
    %p52 = scmp.eq.s32.totalorder %s16, 3
    %p53 = por %p51, %p52
    %p55 = scmp.ne.s32.totalorder %s38, %s54
    %p56 = scmp.eq.s32.totalorder %s16, 0
    %p57 = por %p55, %p56
    %s59 = sadd.s32 %s58, 1
    %p62 = scmp.eq.s32.totalorder %s10, 3
    %p63 = scmp.ne.s32.totalorder %s58, %s60
    %p64 = scmp.eq.s32.totalorder %s10, 0
    %p65 = por %p63, %p64
    %p66 = scmp.ne.s32.totalorder %s58, %s60
    %p67 = scmp.eq.s32.totalorder %s15, 3
    %p68 = por %p66, %p67
    %p69 = scmp.ne.s32.totalorder %s60, %s61
    %p70 = scmp.eq.s32.totalorder %s15, 0
    %p71 = por %p69, %p70
    %p72 = scmp.ne.s32.totalorder %s60, %s61
    %p73 = scmp.eq.s32.totalorder %s16, 3
    %p74 = por %p72, %p73
    %p76 = scmp.ne.s32.totalorder %s61, %s75
    %p77 = scmp.eq.s32.totalorder %s16, 0
    %p78 = por %p76, %p77
    %s79 = smul.u32 %s17, 2
    %s80 = sadd.s32 %s79, %s18
    %s81 = smul.u32 %s29, 2
    %s82 = sadd.s32 %s81, %s25
    %s83 = ssub.s32 %s80, %s82
    %p84 = scmp.eq.s32.totalorder %s83, 0
    %s86 = sadd.s32 %s85, 1
    %s87 = scalar_select %p84, %s85, %s86
    %p90 = pneg %p84
    %p91 = scmp.eq.s32.totalorder %s10, 3
    %p92 = por %p90, %p91
    %p93 = scmp.ne.s32.totalorder %s85, %s88
    %p94 = scmp.eq.s32.totalorder %s10, 0
    %p95 = por %p93, %p94
    %p96 = scmp.ne.s32.totalorder %s85, %s88
    %p97 = scmp.eq.s32.totalorder %s15, 3
    %p98 = por %p96, %p97
    %p99 = scmp.ne.s32.totalorder %s88, %s89
    %p100 = scmp.eq.s32.totalorder %s15, 0
    %p101 = por %p99, %p100
    %p102 = scmp.ne.s32.totalorder %s88, %s89
    %p103 = scmp.eq.s32.totalorder %s16, 3
    %p104 = por %p102, %p103
    %p106 = scmp.ne.s32.totalorder %s89, %s105
    %p107 = scmp.eq.s32.totalorder %s16, 0
    %p108 = por %p106, %p107
    %s109 = smul.u32 %s17, 2
    %s110 = sadd.s32 %s109, %s18
    %s111 = smul.u32 %s29, 2
    %s112 = sadd.s32 %s111, %s25
    %s113 = ssub.s32 %s110, %s112
    %p114 = scmp.eq.s32.totalorder %s113, 0
    %s116 = sadd.s32 %s115, 1
    %s117 = scalar_select %p114, %s115, %s116
    %p120 = pneg %p114
    %p121 = scmp.eq.s32.totalorder %s10, 3
    %p122 = por %p120, %p121
    %p123 = scmp.ne.s32.totalorder %s115, %s118
    %p124 = scmp.eq.s32.totalorder %s10, 0
    %p125 = por %p123, %p124
    %p126 = scmp.ne.s32.totalorder %s115, %s118
    %p127 = scmp.eq.s32.totalorder %s15, 3
    %p128 = por %p126, %p127
    %p129 = scmp.ne.s32.totalorder %s118, %s119
    %p130 = scmp.eq.s32.totalorder %s15, 0
    %p131 = por %p129, %p130
    %p132 = scmp.ne.s32.totalorder %s118, %s119
    %p133 = scmp.eq.s32.totalorder %s16, 3
    %p134 = por %p132, %p133
    %p136 = scmp.ne.s32.totalorder %s119, %s135
    %p137 = scmp.eq.s32.totalorder %s16, 0
    %p138 = por %p136, %p137
    %p139 = scmp.le.s32.totalorder 1, %s10
    %p140 = scmp.lt.s32.totalorder %s10, 5
    %p141 = pnand %p139, %p140
    %p142 = pneg %p141
    // Predicated region
    $region9: #{unet_block.3} parent=5 // pred_check
      _
    $region10: #{unet_block.3} parent=5 // pred_check_branch
      %144 = sbr.rel (%p141) target = $region12
    $region11: #{unet_block.3} parent=5 // pred_region
      %s145 = ssub.s32 %s10, 1
      // Predicated region
      $region13: #{unet_block.3} parent=11 // pred_check
        %p146 = pneg %p71
      $region14: #{unet_block.3} parent=11 // pred_check_branch
        %148 = sbr.rel (%p146) target = $region16
      $region15: #{unet_block.3} parent=11 // pred_region
        _
      $region16: #{unet_block.3} parent=11 // pred_fallthru
        _
    $region12: #{unet_block.3} parent=5 // pred_fallthru
      _
    %p149 = scmp.lt.s32.totalorder %s10, 4
    // Predicated region
    $region17: #{unet_block.3} parent=5 // pred_check
      %p150 = pneg %p149
    $region18: #{unet_block.3} parent=5 // pred_check_branch
      %152 = sbr.rel (%p150) target = $region20
    $region19: #{unet_block.3} parent=5 // pred_region
      // Predicated region
      $region21: #{unet_block.3} parent=19 // pred_check
        %p153 = pneg %p44
      $region22: #{unet_block.3} parent=19 // pred_check_branch
        %155 = sbr.rel (%p153) target = $region24
      $region23: #{unet_block.3} parent=19 // pred_region
        %p156 = scmp.lt.s32.totalorder %s17, 1
        %s157 = scalar_select %p156, %s17, 1
        %p158 = scmp.lt.s32.totalorder %s18, 1
        %s159 = scalar_select %p158, %s18, 1
        %s160 = smul.addr %s159, 2
        %s161 = smul.addr %s157, 4
        %s162 = sadd.s32 %s160, %s161
        %s163 = smul.addr %s162, 8
        %s164 = scalar_lea.vmem %s0, %s163
      $region24: #{unet_block.3} parent=19 // pred_fallthru
        _
    $region20: #{unet_block.3} parent=5 // pred_fallthru
      _
    %p165 = scmp.le.s32.totalorder 1, %s10
    %p166 = scmp.lt.s32.totalorder %s10, 5
    %p167 = pnand %p165, %p166
    %p168 = pneg %p167
    // Predicated region
    $region25: #{unet_block.3} parent=5 // pred_check
      _
    $region26: #{unet_block.3} parent=5 // pred_check_branch
      %170 = sbr.rel (%p167) target = $region28
    $region27: #{unet_block.3} parent=5 // pred_region
      %s171 = ssub.s32 %s10, 1
      %p172 = scmp.lt.s32.totalorder %s19, 1
      %s173 = scalar_select %p172, %s19, 1
      %p174 = scmp.lt.s32.totalorder %s20, 1
      %s175 = scalar_select %p174, %s20, 1
      %s176 = smul.addr %s175, 2
      %s177 = smul.addr %s173, 4
      %s178 = sadd.s32 %s176, %s177
      %s179 = smul.addr %s178, 8
      %s180 = scalar_lea.vmem %s0, %s179
      %p181 = pneg %p50
      %p182 = pneg %p47
      %p183 = pneg %p71
      %p184 = pneg %p68
      %p185 = pneg %p101
      %p186 = pneg %p98
      %s187 = smul.u32 %s19, 2
      %s188 = sadd.s32 %s187, %s20
      %p189 = scmp.lt.s32.totalorder %s188, 3
      %s190 = scalar_select %p189, %s188, 3
      %s191 = smul.addr %s190, 8
      %s192 = scalar_lea.vmem %s2, %s191
      %p193 = pneg %p131
      %p194 = pneg %p128
      %s195 = smul.u32 %s19, 2
      %s196 = sadd.s32 %s195, %s20
      %p197 = scmp.lt.s32.totalorder %s196, 3
      %s198 = scalar_select %p197, %s196, 3
      %s199 = smul.addr %s198, 2
      %s200 = scalar_lea.vmem %s3, %s199
      %p201 = scmp.lt.s32.totalorder %s19, 1
      %s202 = scalar_select %p201, %s19, 1
      %p203 = scmp.lt.s32.totalorder %s20, 1
      %s204 = scalar_select %p203, %s20, 1
      %s205 = smul.addr %s204, 2
      %s206 = smul.addr %s202, 4
      %s207 = sadd.s32 %s205, %s206
      %s208 = smul.addr %s207, 8
      %s209 = scalar_lea.vmem %s0, %s208
      %s210 = smul.u32 %s19, 2
      %s211 = sadd.s32 %s210, %s20
      %p212 = scmp.lt.s32.totalorder %s211, 3
      %s213 = scalar_select %p212, %s211, 3
      %s214 = smul.addr %s213, 8
      %s215 = scalar_lea.vmem %s2, %s214
      %s216 = smul.u32 %s19, 2
      %s217 = sadd.s32 %s216, %s20
      %s218 = smul.u32 %s19, 2
      %s219 = sadd.s32 %s218, %s20
      %p220 = scmp.lt.s32.totalorder %s219, 3
      %s221 = scalar_select %p220, %s219, 3
      %s222 = smul.addr %s221, 2
      %s223 = scalar_lea.vmem %s3, %s222
      %s224 = smul.u32 %s19, 2
      %s225 = sadd.s32 %s224, %s20
      %v227 = vld [vmem:[%s209] sm:$0xff]
      %v228 = vpack.c.bf16 %v227, %v227
      %v229 = vld [vmem:[%s1] sm:$0xf]
      %v230 = vld [vmem:[%s1 + $0x4] sm:$0xf]
      %v231 = vld [vmem:[%s1 + $0x8] sm:$0xf]
      %v232 = vld [vmem:[%s1 + $0xc] sm:$0xf]
      %v233 = vld [vmem:[%s1 + $0x10] sm:$0xf]
      %v234 = vld [vmem:[%s1 + $0x14] sm:$0xf]
      %v235 = vld [vmem:[%s1 + $0x18] sm:$0xf]
      %v236 = vld [vmem:[%s1 + $0x1c] sm:$0xf]
      %v237 = vld [vmem:[%s209 + $0x1] sm:$0xff]
      %v238 = vpack.c.bf16 %v237, %v237
      %s239 = scalar_lea.vmem %s1, 32
      %v240 = vld [vmem:[%s239] sm:$0xf]
      %v241 = vld [vmem:[%s239 + $0x4] sm:$0xf]
      %v242 = vld [vmem:[%s239 + $0x8] sm:$0xf]
      %v243 = vld [vmem:[%s239 + $0xc] sm:$0xf]
      %v244 = vld [vmem:[%s239 + $0x10] sm:$0xf]
      %v245 = vld [vmem:[%s239 + $0x14] sm:$0xf]
      %v246 = vld [vmem:[%s239 + $0x18] sm:$0xf]
      %v247 = vld [vmem:[%s239 + $0x1c] sm:$0xf]
      %v256 = vunpack.c.l.b16 %v240
      %v257 = vunpack.c.l.b16 %v241
      %v258 = vunpack.c.l.b16 %v242
      %v259 = vunpack.c.l.b16 %v243
      %v260 = vunpack.c.l.b16 %v244
      %v261 = vunpack.c.l.b16 %v245
      %v262 = vunpack.c.l.b16 %v246
      %v263 = vunpack.c.l.b16 %v247
      %v264 = vpack.c.b16 %v257, %v256
      %v265 = vpack.c.b16 %v259, %v258
      %v266 = vpack.c.b16 %v261, %v260
      %v267 = vpack.c.b16 %v263, %v262
      %vm272 = vcmask 523264
      %v274 = vsel %vm272, %v238, 0
      %276 = vmatprep.subr.bf16.mxu0 0
      %277 = vmatpush1.bf16.msra.mxu0 %v264
      %278 = vmatprep.subr.bf16.mxu0 0
      %279 = vmatpush1.bf16.msra.mxu0 %v265
      %280 = vmatprep.subr.bf16.mxu0 0
      %281 = vmatpush1.bf16.msra.mxu0 %v266
      %282 = vmatprep.subr.bf16.mxu0 0
      %283 = vmatpush1.bf16.msra.mxu0 %v267
      %284 = vmatprep.subr.bf16.mxu0 0
      %285 = vmatpush1.bf16.msra.mxu0 0
      %286 = vmatprep.subr.bf16.mxu0 0
      %287 = vmatpush1.bf16.msra.mxu0 0
      %288 = vmatprep.subr.bf16.mxu0 0
      %289 = vmatpush1.bf16.msra.mxu0 0
      %290 = vmatprep.subr.bf16.mxu0 0
      %291 = vmatpush1.bf16.msra.mxu0 0
      %292 = vmatprep.subr.bf16.mxu0 0
      %293 = vmatpush1.bf16.msra.mxu0 0
      %294 = vmatprep.subr.bf16.mxu0 0
      %295 = vmatpush1.bf16.msra.mxu0 0
      %296 = vmatprep.subr.bf16.mxu0 0
      %297 = vmatpush1.bf16.msra.mxu0 0
      %298 = vmatprep.subr.bf16.mxu0 0
      %299 = vmatpush1.bf16.msra.mxu0 0
      %300 = vmatprep.subr.bf16.mxu0 0
      %301 = vmatpush1.bf16.msra.mxu0 0
      %302 = vmatprep.subr.bf16.mxu0 0
      %303 = vmatpush1.bf16.msra.mxu0 0
      %304 = vmatprep.subr.bf16.mxu0 0
      %305 = vmatpush1.bf16.msra.mxu0 0
      %306 = vmatprep.subr.bf16.mxu0 0
      %307 = vmatpush1.bf16.msra.mxu0 0
      %308 = vmatprep.mubr.bf16.mxu0 0
      %309 = vmatmul.mubr.bf16.gmra.mrb[0].mxu0 %v274
      %v310 = vpop.f32.mrb[0].mxu0
      %v311 = vadd.f32 0.0, %v310
      %v312 = vpop.f32.mrb[0].mxu0
      %v313 = vpop.f32.mrb[0].mxu0
      %v314 = vpop.f32.mrb[0].mxu0
      %315 = vdwg.mxu0
      %v324 = vunpack.c.l.b16 %v229
      %v325 = vunpack.c.l.b16 %v230
      %v326 = vunpack.c.l.b16 %v231
      %v327 = vunpack.c.l.b16 %v232
      %v328 = vunpack.c.l.b16 %v233
      %v329 = vunpack.c.l.b16 %v234
      %v330 = vunpack.c.l.b16 %v235
      %v331 = vunpack.c.l.b16 %v236
      %v332 = vpack.c.b16 %v325, %v324
      %v333 = vpack.c.b16 %v327, %v326
      %v334 = vpack.c.b16 %v329, %v328
      %v335 = vpack.c.b16 %v331, %v330
      %v341 = vsel %vm272, %v228, 0
      %343 = vmatprep.subr.bf16.mxu0 0
      %344 = vmatpush1.bf16.msra.mxu0 %v332
      %345 = vmatprep.subr.bf16.mxu0 0
      %346 = vmatpush1.bf16.msra.mxu0 %v333
      %347 = vmatprep.subr.bf16.mxu0 0
      %348 = vmatpush1.bf16.msra.mxu0 %v334
      %349 = vmatprep.subr.bf16.mxu0 0
      %350 = vmatpush1.bf16.msra.mxu0 %v335
      %351 = vmatprep.subr.bf16.mxu0 0
      %352 = vmatpush1.bf16.msra.mxu0 0
      %353 = vmatprep.subr.bf16.mxu0 0
      %354 = vmatpush1.bf16.msra.mxu0 0
      %355 = vmatprep.subr.bf16.mxu0 0
      %356 = vmatpush1.bf16.msra.mxu0 0
      %357 = vmatprep.subr.bf16.mxu0 0
      %358 = vmatpush1.bf16.msra.mxu0 0
      %359 = vmatprep.subr.bf16.mxu0 0
      %360 = vmatpush1.bf16.msra.mxu0 0
      %361 = vmatprep.subr.bf16.mxu0 0
      %362 = vmatpush1.bf16.msra.mxu0 0
      %363 = vmatprep.subr.bf16.mxu0 0
      %364 = vmatpush1.bf16.msra.mxu0 0
      %365 = vmatprep.subr.bf16.mxu0 0
      %366 = vmatpush1.bf16.msra.mxu0 0
      %367 = vmatprep.subr.bf16.mxu0 0
      %368 = vmatpush1.bf16.msra.mxu0 0
      %369 = vmatprep.subr.bf16.mxu0 0
      %370 = vmatpush1.bf16.msra.mxu0 0
      %371 = vmatprep.subr.bf16.mxu0 0
      %372 = vmatpush1.bf16.msra.mxu0 0
      %373 = vmatprep.subr.bf16.mxu0 0
      %374 = vmatpush1.bf16.msra.mxu0 0
      %375 = vmatprep.mubr.bf16.mxu0 0
      %376 = vmatmul.mubr.bf16.gmra.mrb[0].mxu0 %v341
      %v377 = vpop.f32.mrb[0].mxu0
      %v378 = vadd.f32 %v311, %v377
      %v379 = vpop.f32.mrb[0].mxu0
      %v380 = vpop.f32.mrb[0].mxu0
      %v381 = vpop.f32.mrb[0].mxu0
      %382 = vdwg.mxu0
      %v383 = vld [vmem:[%s209 + $0x2] sm:$0xff]
      %v384 = vpack.c.bf16 %v383, %v383
      %s385 = scalar_lea.vmem %s1, 64
      %v386 = vld [vmem:[%s385] sm:$0xf]
      %v387 = vld [vmem:[%s385 + $0x4] sm:$0xf]
      %v388 = vld [vmem:[%s385 + $0x8] sm:$0xf]
      %v389 = vld [vmem:[%s385 + $0xc] sm:$0xf]
      %v390 = vld [vmem:[%s385 + $0x10] sm:$0xf]
      %v391 = vld [vmem:[%s385 + $0x14] sm:$0xf]
      %v392 = vld [vmem:[%s385 + $0x18] sm:$0xf]
      %v393 = vld [vmem:[%s385 + $0x1c] sm:$0xf]
      %v402 = vunpack.c.l.b16 %v386
      %v403 = vunpack.c.l.b16 %v387
      %v404 = vunpack.c.l.b16 %v388
      %v405 = vunpack.c.l.b16 %v389
      %v406 = vunpack.c.l.b16 %v390
      %v407 = vunpack.c.l.b16 %v391
      %v408 = vunpack.c.l.b16 %v392
      %v409 = vunpack.c.l.b16 %v393
      %v410 = vpack.c.b16 %v403, %v402
      %v411 = vpack.c.b16 %v405, %v404
      %v412 = vpack.c.b16 %v407, %v406
      %v413 = vpack.c.b16 %v409, %v408
      %v419 = vsel %vm272, %v384, 0
      %421 = vmatprep.subr.bf16.mxu0 0
      %422 = vmatpush1.bf16.msra.mxu0 %v410
      %423 = vmatprep.subr.bf16.mxu0 0
      %424 = vmatpush1.bf16.msra.mxu0 %v411
      %425 = vmatprep.subr.bf16.mxu0 0
      %426 = vmatpush1.bf16.msra.mxu0 %v412
      %427 = vmatprep.subr.bf16.mxu0 0
      %428 = vmatpush1.bf16.msra.mxu0 %v413
      %429 = vmatprep.subr.bf16.mxu0 0
      %430 = vmatpush1.bf16.msra.mxu0 0
      %431 = vmatprep.subr.bf16.mxu0 0
      %432 = vmatpush1.bf16.msra.mxu0 0
      %433 = vmatprep.subr.bf16.mxu0 0
      %434 = vmatpush1.bf16.msra.mxu0 0
      %435 = vmatprep.subr.bf16.mxu0 0
      %436 = vmatpush1.bf16.msra.mxu0 0
      %437 = vmatprep.subr.bf16.mxu0 0
      %438 = vmatpush1.bf16.msra.mxu0 0
      %439 = vmatprep.subr.bf16.mxu0 0
      %440 = vmatpush1.bf16.msra.mxu0 0
      %441 = vmatprep.subr.bf16.mxu0 0
      %442 = vmatpush1.bf16.msra.mxu0 0
      %443 = vmatprep.subr.bf16.mxu0 0
      %444 = vmatpush1.bf16.msra.mxu0 0
      %445 = vmatprep.subr.bf16.mxu0 0
      %446 = vmatpush1.bf16.msra.mxu0 0
      %447 = vmatprep.subr.bf16.mxu0 0
      %448 = vmatpush1.bf16.msra.mxu0 0
      %449 = vmatprep.subr.bf16.mxu0 0
      %450 = vmatpush1.bf16.msra.mxu0 0
      %451 = vmatprep.subr.bf16.mxu0 0
      %452 = vmatpush1.bf16.msra.mxu0 0
      %453 = vmatprep.mubr.bf16.mxu0 0
      %454 = vmatmul.mubr.bf16.gmra.mrb[0].mxu0 %v419
      %v455 = vpop.f32.mrb[0].mxu0
      %v456 = vadd.f32 0.0, %v455
      %v457 = vpop.f32.mrb[0].mxu0
      %v458 = vpop.f32.mrb[0].mxu0
      %v459 = vpop.f32.mrb[0].mxu0
      %460 = vdwg.mxu0
      %v461 = vadd.f32 %v378, %v456
      %462 = vst [vmem:[%s215] sm:$0xff] %v461
      %v463 = vrot.slane %v461, 4
      %v464 = vadd.f32 %v461, %v463
      %v465 = vrot.slane %v464, 2
      %v466 = vadd.f32 %v464, %v465
      %v467 = vrot.slane %v466, 1
      %v468 = vadd.f32 %v466, %v467
      %469 = vst [vmem:[%s223] sm:$0x1] %v468
      %v470 = vmul.f32 %v461, %v461
      %v471 = vrot.slane %v470, 4
      %v472 = vadd.f32 %v470, %v471
      %v473 = vrot.slane %v472, 2
      %v474 = vadd.f32 %v472, %v473
      %v475 = vrot.slane %v474, 1
      %v476 = vadd.f32 %v474, %v475
      %477 = vst [vmem:[%s223 + $0x1] sm:$0x1] %v476
      %s478 = smul.u32 %s19, 2
      %s479 = sadd.s32 %s478, %s20
      %p480 = scmp.lt.s32.totalorder %s479, 3
      %s481 = scalar_select %p480, %s479, 3
      %s482 = smul.addr %s481, 8
      %s483 = scalar_lea.vmem %s2, %s482
      %s484 = smul.u32 %s19, 2
      %s485 = sadd.s32 %s484, %s20
      %p486 = scmp.lt.s32.totalorder %s485, 3
      %s487 = scalar_select %p486, %s485, 3
      %s488 = smul.addr %s487, 2
      %s489 = scalar_lea.vmem %s3, %s488
      // Predicated region
      $region29: #{unet_block.3} parent=27 // pred_check
        %p490 = pneg %p98
      $region30: #{unet_block.3} parent=27 // pred_check_branch
        %492 = sbr.rel (%p490) target = $region32
      $region31: #{unet_block.3} parent=27 // pred_region
        %s493 = smul.u32 %s19, 2
        %s494 = sadd.s32 %s493, %s20
      $region32: #{unet_block.3} parent=27 // pred_fallthru
        _
      // Predicated region
      $region33: #{unet_block.3} parent=27 // pred_check
        %p495 = pneg %p128
      $region34: #{unet_block.3} parent=27 // pred_check_branch
        %497 = sbr.rel (%p495) target = $region36
      $region35: #{unet_block.3} parent=27 // pred_region
        %s498 = smul.u32 %s19, 2
        %s499 = sadd.s32 %s498, %s20
      $region36: #{unet_block.3} parent=27 // pred_fallthru
        _
    $region28: #{unet_block.3} parent=5 // pred_fallthru
      _
    %p500 = scmp.le.s32.totalorder 2, %s10
    // Predicated region
    $region37: #{unet_block.3} parent=5 // pred_check
      %p501 = pneg %p500
    $region38: #{unet_block.3} parent=5 // pred_check_branch
      %503 = sbr.rel (%p501) target = $region40
    $region39: #{unet_block.3} parent=5 // pred_region
      %s504 = ssub.s32 %s10, 2
      // Predicated region
      $region41: #{unet_block.3} parent=39 // pred_check
        %p505 = pneg %p104
      $region42: #{unet_block.3} parent=39 // pred_check_branch
        %507 = sbr.rel (%p505) target = $region44
      $region43: #{unet_block.3} parent=39 // pred_region
        %s508 = smul.u32 %s21, 2
        %s509 = sadd.s32 %s508, %s22
        %p510 = scmp.lt.s32.totalorder %s509, 3
        %s511 = scalar_select %p510, %s509, 3
        %s512 = smul.addr %s511, 8
        %s513 = scalar_lea.vmem %s2, %s512
      $region44: #{unet_block.3} parent=39 // pred_fallthru
        _
      // Predicated region
      $region45: #{unet_block.3} parent=39 // pred_check
        %p514 = pneg %p134
      $region46: #{unet_block.3} parent=39 // pred_check_branch
        %516 = sbr.rel (%p514) target = $region48
      $region47: #{unet_block.3} parent=39 // pred_region
        %s517 = smul.u32 %s21, 2
        %s518 = sadd.s32 %s517, %s22
        %p519 = scmp.lt.s32.totalorder %s518, 3
        %s520 = scalar_select %p519, %s518, 3
        %s521 = smul.addr %s520, 2
        %s522 = scalar_lea.vmem %s3, %s521
      $region48: #{unet_block.3} parent=39 // pred_fallthru
        _
    $region40: #{unet_block.3} parent=5 // pred_fallthru
      _
  $region6: #{unet_block.3} parent=0 // loop_footer
    %s14 = sadd.s32 1, %s10
  $region7: #{unet_block.3} parent=0 // loop_footer_branch
    %9 = sbr.rel target = $region3
  $region8: #{unet_block.3} parent=0 // loop_exit
    _

// kernel: unet_block.4
$region0: #{unet_block.4}
  #allocation0 [shape = 'u32[]', space=smem, size = 0x4, offset = 0x4, fixed_abs, tag = 'smem constant byte address 0x4 - core index']
  #allocation1 [shape = 'u32[144,128]{1,0:T(1,128)}', space=vmem, size = 0x12000, scoped, tag = 'internal scratch']
  %s0 = inlined_call_operand.vmem [shape: f32[2,2,10,128], index: 0, kind: input, shape index: {}]
  %s1 = inlined_call_operand.vmem [shape: f32[1,128], index: 1, kind: input, shape index: {}]
  %s2 = inlined_call_operand.vmem [shape: f32[1,128], index: 2, kind: input, shape index: {}]
  %s3 = inlined_call_operand.vmem [shape: bf16[3,128,128], index: 3, kind: input, shape index: {}]
  %s4 = inlined_call_operand.vmem [shape: f32[32,128], index: 4, kind: output, shape index: {0}]
  %s5 = inlined_call_operand.vmem [shape: f32[4,2,128], index: 5, kind: output, shape index: {1}]
  %6 = xla_tuple %s4, %s5
  %s7 = sld [smem:[#allocation0]]
  $region57: #{unet_block.4} parent=0
    _
  %s9 = ssub.s32 1, %s7
  %s10 = scalar_select 0, %s9, %s7
  loop: start=0, step=1, limit=6
  $region2: #{unet_block.4} parent=0 // loop_pre_header
    _
  $region3: #{unet_block.4} parent=0 // loop_header
    %s12 = sphi 0, %s16
    %p13 = scmp.ge.s32.totalorder %s12, 6
    %s19 = sphi 0, %s31
    %s20 = sphi 0, %s27
    %s21 = sphi 0, %s19
    %s22 = sphi 0, %s20
    %s23 = sphi 0, %s21
    %s24 = sphi 0, %s22
    %s36 = sphi 0, %s38
    %s39 = sphi 0, %s36
    %s40 = sphi 0, %s39
    %s56 = sphi 0, %s40
    %s60 = sphi 0, %s60
    %s62 = sphi 0, %s60
    %s63 = sphi 0, %s62
    %s77 = sphi 0, %s63
    %s81 = sphi 0, %s81
    %s83 = sphi 0, %s81
    %s84 = sphi 0, %s83
    %s98 = sphi 0, %s84
    %s102 = sphi 0, %s102
    %s104 = sphi 0, %s102
    %s105 = sphi 0, %s104
    %s119 = sphi 0, %s105
    %s129 = sphi 0, %s131
    %s132 = sphi 0, %s129
    %s133 = sphi 0, %s132
    %s149 = sphi 0, %s133
    %s159 = sphi 0, %s161
    %s162 = sphi 0, %s159
    %s163 = sphi 0, %s162
    %s179 = sphi 0, %s163
  $region4: #{unet_block.4} parent=0 // loop_header_branch
    %15 = sbr.rel (%p13) target = $region8
  $region5: #{unet_block.4} parent=0 // loop_body
    %s17 = ssub.s32 %s12, 1
    %s18 = ssub.s32 %s12, 2
    %s25 = sadd.s32 1, %s20
    %p26 = scmp.ge.s32.totalorder %s25, 2
    %s27 = scalar_select %p26, 0, %s25
    %s28 = sadd.s32 1, %s19
    %s29 = scalar_select %p26, %s28, %s19
    %p30 = scmp.ge.s32.totalorder %s29, 2
    %s31 = scalar_select %p30, 0, %s29
    %s32 = ssub.s32 %s19, %s31
    %s33 = ssub.s32 %s20, %s27
    %s34 = sor.u32 %s32, %s33
    %p35 = scmp.eq.s32.totalorder %s34, 0
    %s37 = sadd.s32 %s36, 1
    %s38 = scalar_select %p35, %s36, %s37
    %p41 = pneg %p35
    %p42 = scmp.eq.s32.totalorder %s12, 3
    %p43 = por %p41, %p42
    %p44 = scmp.ne.s32.totalorder %s36, %s39
    %p45 = scmp.eq.s32.totalorder %s12, 0
    %p46 = por %p44, %p45
    %p47 = scmp.ne.s32.totalorder %s36, %s39
    %p48 = scmp.eq.s32.totalorder %s17, 3
    %p49 = por %p47, %p48
    %p50 = scmp.ne.s32.totalorder %s39, %s40
    %p51 = scmp.eq.s32.totalorder %s17, 0
    %p52 = por %p50, %p51
    %p53 = scmp.ne.s32.totalorder %s39, %s40
    %p54 = scmp.eq.s32.totalorder %s18, 3
    %p55 = por %p53, %p54
    %p57 = scmp.ne.s32.totalorder %s40, %s56
    %p58 = scmp.eq.s32.totalorder %s18, 0
    %p59 = por %p57, %p58
    %s61 = sadd.s32 %s60, 1
    %p64 = scmp.eq.s32.totalorder %s12, 3
    %p65 = scmp.ne.s32.totalorder %s60, %s62
    %p66 = scmp.eq.s32.totalorder %s12, 0
    %p67 = por %p65, %p66
    %p68 = scmp.ne.s32.totalorder %s60, %s62
    %p69 = scmp.eq.s32.totalorder %s17, 3
    %p70 = por %p68, %p69
    %p71 = scmp.ne.s32.totalorder %s62, %s63
    %p72 = scmp.eq.s32.totalorder %s17, 0
    %p73 = por %p71, %p72
    %p74 = scmp.ne.s32.totalorder %s62, %s63
    %p75 = scmp.eq.s32.totalorder %s18, 3
    %p76 = por %p74, %p75
    %p78 = scmp.ne.s32.totalorder %s63, %s77
    %p79 = scmp.eq.s32.totalorder %s18, 0
    %p80 = por %p78, %p79
    %s82 = sadd.s32 %s81, 1
    %p85 = scmp.eq.s32.totalorder %s12, 3
    %p86 = scmp.ne.s32.totalorder %s81, %s83
    %p87 = scmp.eq.s32.totalorder %s12, 0
    %p88 = por %p86, %p87
    %p89 = scmp.ne.s32.totalorder %s81, %s83
    %p90 = scmp.eq.s32.totalorder %s17, 3
    %p91 = por %p89, %p90
    %p92 = scmp.ne.s32.totalorder %s83, %s84
    %p93 = scmp.eq.s32.totalorder %s17, 0
    %p94 = por %p92, %p93
    %p95 = scmp.ne.s32.totalorder %s83, %s84
    %p96 = scmp.eq.s32.totalorder %s18, 3
    %p97 = por %p95, %p96
    %p99 = scmp.ne.s32.totalorder %s84, %s98
    %p100 = scmp.eq.s32.totalorder %s18, 0
    %p101 = por %p99, %p100
    %s103 = sadd.s32 %s102, 1
    %p106 = scmp.eq.s32.totalorder %s12, 3
    %p107 = scmp.ne.s32.totalorder %s102, %s104
    %p108 = scmp.eq.s32.totalorder %s12, 0
    %p109 = por %p107, %p108
    %p110 = scmp.ne.s32.totalorder %s102, %s104
    %p111 = scmp.eq.s32.totalorder %s17, 3
    %p112 = por %p110, %p111
    %p113 = scmp.ne.s32.totalorder %s104, %s105
    %p114 = scmp.eq.s32.totalorder %s17, 0
    %p115 = por %p113, %p114
    %p116 = scmp.ne.s32.totalorder %s104, %s105
    %p117 = scmp.eq.s32.totalorder %s18, 3
    %p118 = por %p116, %p117
    %p120 = scmp.ne.s32.totalorder %s105, %s119
    %p121 = scmp.eq.s32.totalorder %s18, 0
    %p122 = por %p120, %p121
    %s123 = smul.u32 %s19, 2
    %s124 = sadd.s32 %s123, %s20
    %s125 = smul.u32 %s31, 2
    %s126 = sadd.s32 %s125, %s27
    %s127 = ssub.s32 %s124, %s126
    %p128 = scmp.eq.s32.totalorder %s127, 0
    %s130 = sadd.s32 %s129, 1
    %s131 = scalar_select %p128, %s129, %s130
    %p134 = pneg %p128
    %p135 = scmp.eq.s32.totalorder %s12, 3
    %p136 = por %p134, %p135
    %p137 = scmp.ne.s32.totalorder %s129, %s132
    %p138 = scmp.eq.s32.totalorder %s12, 0
    %p139 = por %p137, %p138
    %p140 = scmp.ne.s32.totalorder %s129, %s132
    %p141 = scmp.eq.s32.totalorder %s17, 3
    %p142 = por %p140, %p141
    %p143 = scmp.ne.s32.totalorder %s132, %s133
    %p144 = scmp.eq.s32.totalorder %s17, 0
    %p145 = por %p143, %p144
    %p146 = scmp.ne.s32.totalorder %s132, %s133
    %p147 = scmp.eq.s32.totalorder %s18, 3
    %p148 = por %p146, %p147
    %p150 = scmp.ne.s32.totalorder %s133, %s149
    %p151 = scmp.eq.s32.totalorder %s18, 0
    %p152 = por %p150, %p151
    %s153 = smul.u32 %s19, 2
    %s154 = sadd.s32 %s153, %s20
    %s155 = smul.u32 %s31, 2
    %s156 = sadd.s32 %s155, %s27
    %s157 = ssub.s32 %s154, %s156
    %p158 = scmp.eq.s32.totalorder %s157, 0
    %s160 = sadd.s32 %s159, 1
    %s161 = scalar_select %p158, %s159, %s160
    %p164 = pneg %p158
    %p165 = scmp.eq.s32.totalorder %s12, 3
    %p166 = por %p164, %p165
    %p167 = scmp.ne.s32.totalorder %s159, %s162
    %p168 = scmp.eq.s32.totalorder %s12, 0
    %p169 = por %p167, %p168
    %p170 = scmp.ne.s32.totalorder %s159, %s162
    %p171 = scmp.eq.s32.totalorder %s17, 3
    %p172 = por %p170, %p171
    %p173 = scmp.ne.s32.totalorder %s162, %s163
    %p174 = scmp.eq.s32.totalorder %s17, 0
    %p175 = por %p173, %p174
    %p176 = scmp.ne.s32.totalorder %s162, %s163
    %p177 = scmp.eq.s32.totalorder %s18, 3
    %p178 = por %p176, %p177
    %p180 = scmp.ne.s32.totalorder %s163, %s179
    %p181 = scmp.eq.s32.totalorder %s18, 0
    %p182 = por %p180, %p181
    %p183 = scmp.le.s32.totalorder 1, %s12
    %p184 = scmp.lt.s32.totalorder %s12, 5
    %p185 = pnand %p183, %p184
    %p186 = pneg %p185
    // Predicated region
    $region9: #{unet_block.4} parent=5 // pred_check
      _
    $region10: #{unet_block.4} parent=5 // pred_check_branch
      %188 = sbr.rel (%p185) target = $region12
    $region11: #{unet_block.4} parent=5 // pred_region
      %s189 = ssub.s32 %s12, 1
      // Predicated region
      $region13: #{unet_block.4} parent=11 // pred_check
        %p190 = pneg %p73
      $region14: #{unet_block.4} parent=11 // pred_check_branch
        %192 = sbr.rel (%p190) target = $region16
      $region15: #{unet_block.4} parent=11 // pred_region
        _
      $region16: #{unet_block.4} parent=11 // pred_fallthru
        _
      // Predicated region
      $region17: #{unet_block.4} parent=11 // pred_check
        %p193 = pneg %p94
      $region18: #{unet_block.4} parent=11 // pred_check_branch
        %195 = sbr.rel (%p193) target = $region20
      $region19: #{unet_block.4} parent=11 // pred_region
        _
      $region20: #{unet_block.4} parent=11 // pred_fallthru
        _
      // Predicated region
      $region21: #{unet_block.4} parent=11 // pred_check
        %p196 = pneg %p115
      $region22: #{unet_block.4} parent=11 // pred_check_branch
        %198 = sbr.rel (%p196) target = $region24
      $region23: #{unet_block.4} parent=11 // pred_region
        _
      $region24: #{unet_block.4} parent=11 // pred_fallthru
        _
    $region12: #{unet_block.4} parent=5 // pred_fallthru
      _
    %p199 = scmp.lt.s32.totalorder %s12, 4
    // Predicated region
    $region25: #{unet_block.4} parent=5 // pred_check
      %p200 = pneg %p199
    $region26: #{unet_block.4} parent=5 // pred_check_branch
      %202 = sbr.rel (%p200) target = $region28
    $region27: #{unet_block.4} parent=5 // pred_region
      // Predicated region
      $region29: #{unet_block.4} parent=27 // pred_check
        %p203 = pneg %p46
      $region30: #{unet_block.4} parent=27 // pred_check_branch
        %205 = sbr.rel (%p203) target = $region32
      $region31: #{unet_block.4} parent=27 // pred_region
        %p206 = scmp.lt.s32.totalorder %s19, 1
        %s207 = scalar_select %p206, %s19, 1
        %p208 = scmp.lt.s32.totalorder %s20, 1
        %s209 = scalar_select %p208, %s20, 1
        %s210 = smul.addr %s209, 2
        %s211 = smul.addr %s207, 4
        %s212 = sadd.s32 %s210, %s211
        %s213 = smul.addr %s212, 8
        %s214 = scalar_lea.vmem %s0, %s213
      $region32: #{unet_block.4} parent=27 // pred_fallthru
        _
    $region28: #{unet_block.4} parent=5 // pred_fallthru
      _
    %p215 = scmp.le.s32.totalorder 1, %s12
    %p216 = scmp.lt.s32.totalorder %s12, 5
    %p217 = pnand %p215, %p216
    %p218 = pneg %p217
    // Predicated region
    $region33: #{unet_block.4} parent=5 // pred_check
      _
    $region34: #{unet_block.4} parent=5 // pred_check_branch
      %220 = sbr.rel (%p217) target = $region36
    $region35: #{unet_block.4} parent=5 // pred_region
      %s221 = ssub.s32 %s12, 1
      %p222 = scmp.lt.s32.totalorder %s21, 1
      %s223 = scalar_select %p222, %s21, 1
      %p224 = scmp.lt.s32.totalorder %s22, 1
      %s225 = scalar_select %p224, %s22, 1
      %s226 = smul.addr %s225, 2
      %s227 = smul.addr %s223, 4
      %s228 = sadd.s32 %s226, %s227
      %s229 = smul.addr %s228, 8
      %s230 = scalar_lea.vmem %s0, %s229
      %p231 = pneg %p52
      %p232 = pneg %p49
      %p233 = pneg %p73
      %p234 = pneg %p70
      %p235 = pneg %p94
      %p236 = pneg %p91
      %p237 = pneg %p115
      %p238 = pneg %p112
      %p239 = pneg %p145
      %p240 = pneg %p142
      %s241 = smul.u32 %s21, 2
      %s242 = sadd.s32 %s241, %s22
      %p243 = scmp.lt.s32.totalorder %s242, 3
      %s244 = scalar_select %p243, %s242, 3
      %s245 = smul.addr %s244, 8
      %s246 = scalar_lea.vmem %s4, %s245
      %p247 = pneg %p175
      %p248 = pneg %p172
      %s249 = smul.u32 %s21, 2
      %s250 = sadd.s32 %s249, %s22
      %p251 = scmp.lt.s32.totalorder %s250, 3
      %s252 = scalar_select %p251, %s250, 3
      %s253 = smul.addr %s252, 2
      %s254 = scalar_lea.vmem %s5, %s253
      %p255 = scmp.lt.s32.totalorder %s21, 1
      %s256 = scalar_select %p255, %s21, 1
      %p257 = scmp.lt.s32.totalorder %s22, 1
      %s258 = scalar_select %p257, %s22, 1
      %s259 = smul.addr %s258, 2
      %s260 = smul.addr %s256, 4
      %s261 = sadd.s32 %s259, %s260
      %s262 = smul.addr %s261, 8
      %s263 = scalar_lea.vmem %s0, %s262
      %s264 = smul.u32 %s21, 2
      %s265 = sadd.s32 %s264, %s22
      %p266 = scmp.lt.s32.totalorder %s265, 3
      %s267 = scalar_select %p266, %s265, 3
      %s268 = smul.addr %s267, 8
      %s269 = scalar_lea.vmem %s4, %s268
      %s270 = smul.u32 %s21, 2
      %s271 = sadd.s32 %s270, %s22
      %s272 = smul.u32 %s21, 2
      %s273 = sadd.s32 %s272, %s22
      %p274 = scmp.lt.s32.totalorder %s273, 3
      %s275 = scalar_select %p274, %s273, 3
      %s276 = smul.addr %s275, 2
      %s277 = scalar_lea.vmem %s5, %s276
      %s278 = smul.u32 %s21, 2
      %s279 = sadd.s32 %s278, %s22
      %v281 = vld [vmem:[%s263] sm:$0xff]
      %v282 = vld [vmem:[%s263 + $0x8] sm:$0x3]
      %v283 = vld [vmem:[%s1] sm:$0x1]
      %v285 = vlaneseq
      %v286 = vshrl.u32 %v285, 7
      %v287 = vsub.s32 0, %v286
      %v288 = vrot.slane %v283, %v287
      %v290 = vmul.f32 %v281, %v288
      %v291 = vmul.f32 %v282, %v288
      %v292 = vld [vmem:[%s2] sm:$0x1]
      %v294 = vlaneseq
      %v295 = vshrl.u32 %v294, 7
      %v296 = vsub.s32 0, %v295
      %v297 = vrot.slane %v292, %v296
      %v299 = vadd.f32 %v290, %v297
      %v300 = vadd.f32 %v291, %v297
      %vm301 = vcmp.gt.f32.partialorder %v299, 0.0
      %vm302 = vcmp.gt.f32.partialorder %v300, 0.0
      %v303 = vmul.f32 %v299, 0.1
      %v304 = vmul.f32 %v300, 0.1
      %v305 = vsel %vm301, %v299, %v303
      %v306 = vsel %vm302, %v300, %v304
      %s307 = smul.u32 %s22, 8
      %v308 = vlaneseq
      %v309 = vshrl.u32 %v308, 7
      %v310 = vadd.s32 %v309, 8
      %v311 = vstv %s307
      %v312 = vadd.s32 %v311, %v309
      %v313 = vadd.s32 %v311, %v310
      %vm314 = vcmp.gt.s32.totalorder %v312, 0
      %vm315 = vcmp.gt.s32.totalorder %v313, 0
      %vm316 = vcmp.lt.s32.totalorder %v312, 17
      %vm317 = vcmp.lt.s32.totalorder %v313, 17
      %vm318 = vmand %vm314, %vm316
      %vm319 = vmand %vm315, %vm317
      %v320 = vsel %vm318, 1, 0
      %v321 = vsel %vm319, 1, 0
      %vm322 = vcmp.eq.s32.totalorder %v320, 1
      %vm323 = vcmp.eq.s32.totalorder %v321, 1
      %v324 = vsel %vm322, %v305, 0.0
      %v325 = vsel %vm323, %v306, 0.0
      %v326 = vpack.c.bf16 %v324, %v324
      %v327 = vld [vmem:[%s3] sm:$0xf]
      %v328 = vld [vmem:[%s3 + $0x4] sm:$0xf]
      %v329 = vld [vmem:[%s3 + $0x8] sm:$0xf]
      %v330 = vld [vmem:[%s3 + $0xc] sm:$0xf]
      %v331 = vld [vmem:[%s3 + $0x10] sm:$0xf]
      %v332 = vld [vmem:[%s3 + $0x14] sm:$0xf]
      %v333 = vld [vmem:[%s3 + $0x18] sm:$0xf]
      %v334 = vld [vmem:[%s3 + $0x1c] sm:$0xf]
      %v335 = vld [vmem:[%s3 + $0x20] sm:$0xf]
      %v336 = vld [vmem:[%s3 + $0x24] sm:$0xf]
      %v337 = vld [vmem:[%s3 + $0x28] sm:$0xf]
      %v338 = vld [vmem:[%s3 + $0x2c] sm:$0xf]
      %v339 = vld [vmem:[%s3 + $0x30] sm:$0xf]
      %v340 = vld [vmem:[%s3 + $0x34] sm:$0xf]
      %v341 = vld [vmem:[%s3 + $0x38] sm:$0xf]
      %v342 = vld [vmem:[%s3 + $0x3c] sm:$0xf]
      %v343 = vpack.c.bf16 %v325, %v324
      %s344 = scalar_lea.vmem %s3, 64
      %v345 = vld [vmem:[%s344] sm:$0xf]
      %v346 = vld [vmem:[%s344 + $0x4] sm:$0xf]
      %v347 = vld [vmem:[%s344 + $0x8] sm:$0xf]
      %v348 = vld [vmem:[%s344 + $0xc] sm:$0xf]
      %v349 = vld [vmem:[%s344 + $0x10] sm:$0xf]
      %v350 = vld [vmem:[%s344 + $0x14] sm:$0xf]
      %v351 = vld [vmem:[%s344 + $0x18] sm:$0xf]
      %v352 = vld [vmem:[%s344 + $0x1c] sm:$0xf]
      %v353 = vld [vmem:[%s344 + $0x20] sm:$0xf]
      %v354 = vld [vmem:[%s344 + $0x24] sm:$0xf]
      %v355 = vld [vmem:[%s344 + $0x28] sm:$0xf]
      %v356 = vld [vmem:[%s344 + $0x2c] sm:$0xf]
      %v357 = vld [vmem:[%s344 + $0x30] sm:$0xf]
      %v358 = vld [vmem:[%s344 + $0x34] sm:$0xf]
      %v359 = vld [vmem:[%s344 + $0x38] sm:$0xf]
      %v360 = vld [vmem:[%s344 + $0x3c] sm:$0xf]
      %v362 = vshrl.u32 %v343, 16
      %v364 = vshll.u32 %v343, 16
      %v366 = vrot.slane %v364, 1
      %v367 = vor.u32 %v362, %v366
      %v385 = vunpack.c.l.b16 %v345
      %v386 = vunpack.c.l.b16 %v346
      %v387 = vunpack.c.l.b16 %v347
      %v388 = vunpack.c.l.b16 %v348
      %v389 = vunpack.c.l.b16 %v349
      %v390 = vunpack.c.l.b16 %v350
      %v391 = vunpack.c.l.b16 %v351
      %v392 = vunpack.c.l.b16 %v352
      %v393 = vunpack.c.l.b16 %v353
      %v394 = vunpack.c.l.b16 %v354
      %v395 = vunpack.c.l.b16 %v355
      %v396 = vunpack.c.l.b16 %v356
      %v397 = vunpack.c.l.b16 %v357
      %v398 = vunpack.c.l.b16 %v358
      %v399 = vunpack.c.l.b16 %v359
      %v400 = vunpack.c.l.b16 %v360
      %v401 = vpack.c.b16 %v386, %v385
      %v402 = vpack.c.b16 %v388, %v387
      %v403 = vpack.c.b16 %v390, %v389
      %v404 = vpack.c.b16 %v392, %v391
      %v405 = vpack.c.b16 %v394, %v393
      %v406 = vpack.c.b16 %v396, %v395
      %v407 = vpack.c.b16 %v398, %v397
      %v408 = vpack.c.b16 %v400, %v399
      %417 = vmatprep.subr.bf16.mxu0 0
      %418 = vmatpush1.bf16.msra.mxu0 %v401
      %419 = vmatprep.subr.bf16.mxu0 0
      %420 = vmatpush1.bf16.msra.mxu0 %v402
      %421 = vmatprep.subr.bf16.mxu0 0
      %422 = vmatpush1.bf16.msra.mxu0 %v403
      %423 = vmatprep.subr.bf16.mxu0 0
      %424 = vmatpush1.bf16.msra.mxu0 %v404
      %425 = vmatprep.subr.bf16.mxu0 0
      %426 = vmatpush1.bf16.msra.mxu0 %v405
      %427 = vmatprep.subr.bf16.mxu0 0
      %428 = vmatpush1.bf16.msra.mxu0 %v406
      %429 = vmatprep.subr.bf16.mxu0 0
      %430 = vmatpush1.bf16.msra.mxu0 %v407
      %431 = vmatprep.subr.bf16.mxu0 0
      %432 = vmatpush1.bf16.msra.mxu0 %v408
      %433 = vmatprep.subr.bf16.mxu0 0
      %434 = vmatpush1.bf16.msra.mxu0 0
      %435 = vmatprep.subr.bf16.mxu0 0
      %436 = vmatpush1.bf16.msra.mxu0 0
      %437 = vmatprep.subr.bf16.mxu0 0
      %438 = vmatpush1.bf16.msra.mxu0 0
      %439 = vmatprep.subr.bf16.mxu0 0
      %440 = vmatpush1.bf16.msra.mxu0 0
      %441 = vmatprep.subr.bf16.mxu0 0
      %442 = vmatpush1.bf16.msra.mxu0 0
      %443 = vmatprep.subr.bf16.mxu0 0
      %444 = vmatpush1.bf16.msra.mxu0 0
      %445 = vmatprep.subr.bf16.mxu0 0
      %446 = vmatpush1.bf16.msra.mxu0 0
      %447 = vmatprep.subr.bf16.mxu0 0
      %448 = vmatpush1.bf16.msra.mxu0 0
      %449 = vmatprep.mubr.bf16.mxu0 0
      %450 = vmatmul.mubr.bf16.gmra.mrb[0].mxu0 %v367
      %v451 = vpop.f32.mrb[0].mxu0
      %v452 = vadd.f32 0.0, %v451
      %v453 = vpop.f32.mrb[0].mxu0
      %v454 = vpop.f32.mrb[0].mxu0
      %v455 = vpop.f32.mrb[0].mxu0
      %456 = vdwg.mxu0
      %v473 = vunpack.c.l.b16 %v327
      %v474 = vunpack.c.l.b16 %v328
      %v475 = vunpack.c.l.b16 %v329
      %v476 = vunpack.c.l.b16 %v330
      %v477 = vunpack.c.l.b16 %v331
      %v478 = vunpack.c.l.b16 %v332
      %v479 = vunpack.c.l.b16 %v333
      %v480 = vunpack.c.l.b16 %v334
      %v481 = vunpack.c.l.b16 %v335
      %v482 = vunpack.c.l.b16 %v336
      %v483 = vunpack.c.l.b16 %v337
      %v484 = vunpack.c.l.b16 %v338
      %v485 = vunpack.c.l.b16 %v339
      %v486 = vunpack.c.l.b16 %v340
      %v487 = vunpack.c.l.b16 %v341
      %v488 = vunpack.c.l.b16 %v342
      %v489 = vpack.c.b16 %v474, %v473
      %v490 = vpack.c.b16 %v476, %v475
      %v491 = vpack.c.b16 %v478, %v477
      %v492 = vpack.c.b16 %v480, %v479
      %v493 = vpack.c.b16 %v482, %v481
      %v494 = vpack.c.b16 %v484, %v483
      %v495 = vpack.c.b16 %v486, %v485
      %v496 = vpack.c.b16 %v488, %v487
      %505 = vmatprep.subr.bf16.mxu0 0
      %506 = vmatpush1.bf16.msra.mxu0 %v489
      %507 = vmatprep.subr.bf16.mxu0 0
      %508 = vmatpush1.bf16.msra.mxu0 %v490
      %509 = vmatprep.subr.bf16.mxu0 0
      %510 = vmatpush1.bf16.msra.mxu0 %v491
      %511 = vmatprep.subr.bf16.mxu0 0
      %512 = vmatpush1.bf16.msra.mxu0 %v492
      %513 = vmatprep.subr.bf16.mxu0 0
      %514 = vmatpush1.bf16.msra.mxu0 %v493
      %515 = vmatprep.subr.bf16.mxu0 0
      %516 = vmatpush1.bf16.msra.mxu0 %v494
      %517 = vmatprep.subr.bf16.mxu0 0
      %518 = vmatpush1.bf16.msra.mxu0 %v495
      %519 = vmatprep.subr.bf16.mxu0 0
      %520 = vmatpush1.bf16.msra.mxu0 %v496
      %521 = vmatprep.subr.bf16.mxu0 0
      %522 = vmatpush1.bf16.msra.mxu0 0
      %523 = vmatprep.subr.bf16.mxu0 0
      %524 = vmatpush1.bf16.msra.mxu0 0
      %525 = vmatprep.subr.bf16.mxu0 0
      %526 = vmatpush1.bf16.msra.mxu0 0
      %527 = vmatprep.subr.bf16.mxu0 0
      %528 = vmatpush1.bf16.msra.mxu0 0
      %529 = vmatprep.subr.bf16.mxu0 0
      %530 = vmatpush1.bf16.msra.mxu0 0
      %531 = vmatprep.subr.bf16.mxu0 0
      %532 = vmatpush1.bf16.msra.mxu0 0
      %533 = vmatprep.subr.bf16.mxu0 0
      %534 = vmatpush1.bf16.msra.mxu0 0
      %535 = vmatprep.subr.bf16.mxu0 0
      %536 = vmatpush1.bf16.msra.mxu0 0
      %537 = vmatprep.mubr.bf16.mxu0 0
      %538 = vmatmul.mubr.bf16.gmra.mrb[0].mxu0 %v326
      %v539 = vpop.f32.mrb[0].mxu0
      %v540 = vadd.f32 %v452, %v539
      %v541 = vpop.f32.mrb[0].mxu0
      %v542 = vpop.f32.mrb[0].mxu0
      %v543 = vpop.f32.mrb[0].mxu0
      %544 = vdwg.mxu0
      %s545 = scalar_lea.vmem %s3, 128
      %v546 = vld [vmem:[%s545] sm:$0xf]
      %v547 = vld [vmem:[%s545 + $0x4] sm:$0xf]
      %v548 = vld [vmem:[%s545 + $0x8] sm:$0xf]
      %v549 = vld [vmem:[%s545 + $0xc] sm:$0xf]
      %v550 = vld [vmem:[%s545 + $0x10] sm:$0xf]
      %v551 = vld [vmem:[%s545 + $0x14] sm:$0xf]
      %v552 = vld [vmem:[%s545 + $0x18] sm:$0xf]
      %v553 = vld [vmem:[%s545 + $0x1c] sm:$0xf]
      %v554 = vld [vmem:[%s545 + $0x20] sm:$0xf]
      %v555 = vld [vmem:[%s545 + $0x24] sm:$0xf]
      %v556 = vld [vmem:[%s545 + $0x28] sm:$0xf]
      %v557 = vld [vmem:[%s545 + $0x2c] sm:$0xf]
      %v558 = vld [vmem:[%s545 + $0x30] sm:$0xf]
      %v559 = vld [vmem:[%s545 + $0x34] sm:$0xf]
      %v560 = vld [vmem:[%s545 + $0x38] sm:$0xf]
      %v561 = vld [vmem:[%s545 + $0x3c] sm:$0xf]
      %v563 = vrot.slane %v343, 1
      %v581 = vunpack.c.l.b16 %v546
      %v582 = vunpack.c.l.b16 %v547
      %v583 = vunpack.c.l.b16 %v548
      %v584 = vunpack.c.l.b16 %v549
      %v585 = vunpack.c.l.b16 %v550
      %v586 = vunpack.c.l.b16 %v551
      %v587 = vunpack.c.l.b16 %v552
      %v588 = vunpack.c.l.b16 %v553
      %v589 = vunpack.c.l.b16 %v554
      %v590 = vunpack.c.l.b16 %v555
      %v591 = vunpack.c.l.b16 %v556
      %v592 = vunpack.c.l.b16 %v557
      %v593 = vunpack.c.l.b16 %v558
      %v594 = vunpack.c.l.b16 %v559
      %v595 = vunpack.c.l.b16 %v560
      %v596 = vunpack.c.l.b16 %v561
      %v597 = vpack.c.b16 %v582, %v581
      %v598 = vpack.c.b16 %v584, %v583
      %v599 = vpack.c.b16 %v586, %v585
      %v600 = vpack.c.b16 %v588, %v587
      %v601 = vpack.c.b16 %v590, %v589
      %v602 = vpack.c.b16 %v592, %v591
      %v603 = vpack.c.b16 %v594, %v593
      %v604 = vpack.c.b16 %v596, %v595
      %613 = vmatprep.subr.bf16.mxu0 0
      %614 = vmatpush1.bf16.msra.mxu0 %v597
      %615 = vmatprep.subr.bf16.mxu0 0
      %616 = vmatpush1.bf16.msra.mxu0 %v598
      %617 = vmatprep.subr.bf16.mxu0 0
      %618 = vmatpush1.bf16.msra.mxu0 %v599
      %619 = vmatprep.subr.bf16.mxu0 0
      %620 = vmatpush1.bf16.msra.mxu0 %v600
      %621 = vmatprep.subr.bf16.mxu0 0
      %622 = vmatpush1.bf16.msra.mxu0 %v601
      %623 = vmatprep.subr.bf16.mxu0 0
      %624 = vmatpush1.bf16.msra.mxu0 %v602
      %625 = vmatprep.subr.bf16.mxu0 0
      %626 = vmatpush1.bf16.msra.mxu0 %v603
      %627 = vmatprep.subr.bf16.mxu0 0
      %628 = vmatpush1.bf16.msra.mxu0 %v604
      %629 = vmatprep.subr.bf16.mxu0 0
      %630 = vmatpush1.bf16.msra.mxu0 0
      %631 = vmatprep.subr.bf16.mxu0 0
      %632 = vmatpush1.bf16.msra.mxu0 0
      %633 = vmatprep.subr.bf16.mxu0 0
      %634 = vmatpush1.bf16.msra.mxu0 0
      %635 = vmatprep.subr.bf16.mxu0 0
      %636 = vmatpush1.bf16.msra.mxu0 0
      %637 = vmatprep.subr.bf16.mxu0 0
      %638 = vmatpush1.bf16.msra.mxu0 0
      %639 = vmatprep.subr.bf16.mxu0 0
      %640 = vmatpush1.bf16.msra.mxu0 0
      %641 = vmatprep.subr.bf16.mxu0 0
      %642 = vmatpush1.bf16.msra.mxu0 0
      %643 = vmatprep.subr.bf16.mxu0 0
      %644 = vmatpush1.bf16.msra.mxu0 0
      %645 = vmatprep.mubr.bf16.mxu0 0
      %646 = vmatmul.mubr.bf16.gmra.mrb[0].mxu0 %v563
      %v647 = vpop.f32.mrb[0].mxu0
      %v648 = vadd.f32 0.0, %v647
      %v649 = vpop.f32.mrb[0].mxu0
      %v650 = vpop.f32.mrb[0].mxu0
      %v651 = vpop.f32.mrb[0].mxu0
      %652 = vdwg.mxu0
      %v653 = vadd.f32 %v540, %v648
      %654 = vst [vmem:[%s269] sm:$0xff] %v653
      %v655 = vrot.slane %v653, 4
      %v656 = vadd.f32 %v653, %v655
      %v657 = vrot.slane %v656, 2
      %v658 = vadd.f32 %v656, %v657
      %v659 = vrot.slane %v658, 1
      %v660 = vadd.f32 %v658, %v659
      %661 = vst [vmem:[%s277] sm:$0x1] %v660
      %v662 = vmul.f32 %v653, %v653
      %v663 = vrot.slane %v662, 4
      %v664 = vadd.f32 %v662, %v663
      %v665 = vrot.slane %v664, 2
      %v666 = vadd.f32 %v664, %v665
      %v667 = vrot.slane %v666, 1
      %v668 = vadd.f32 %v666, %v667
      %669 = vst [vmem:[%s277 + $0x1] sm:$0x1] %v668
      %s670 = smul.u32 %s21, 2
      %s671 = sadd.s32 %s670, %s22
      %p672 = scmp.lt.s32.totalorder %s671, 3
      %s673 = scalar_select %p672, %s671, 3
      %s674 = smul.addr %s673, 8
      %s675 = scalar_lea.vmem %s4, %s674
      %s676 = smul.u32 %s21, 2
      %s677 = sadd.s32 %s676, %s22
      %p678 = scmp.lt.s32.totalorder %s677, 3
      %s679 = scalar_select %p678, %s677, 3
      %s680 = smul.addr %s679, 2
      %s681 = scalar_lea.vmem %s5, %s680
      // Predicated region
      $region37: #{unet_block.4} parent=35 // pred_check
        %p682 = pneg %p142
      $region38: #{unet_block.4} parent=35 // pred_check_branch
        %684 = sbr.rel (%p682) target = $region40
      $region39: #{unet_block.4} parent=35 // pred_region
        %s685 = smul.u32 %s21, 2
        %s686 = sadd.s32 %s685, %s22
      $region40: #{unet_block.4} parent=35 // pred_fallthru
        _
      // Predicated region
      $region41: #{unet_block.4} parent=35 // pred_check
        %p687 = pneg %p172
      $region42: #{unet_block.4} parent=35 // pred_check_branch
        %689 = sbr.rel (%p687) target = $region44
      $region43: #{unet_block.4} parent=35 // pred_region
        %s690 = smul.u32 %s21, 2
        %s691 = sadd.s32 %s690, %s22
      $region44: #{unet_block.4} parent=35 // pred_fallthru
        _
    $region36: #{unet_block.4} parent=5 // pred_fallthru
      _
    %p692 = scmp.le.s32.totalorder 2, %s12
    // Predicated region
    $region45: #{unet_block.4} parent=5 // pred_check
      %p693 = pneg %p692
    $region46: #{unet_block.4} parent=5 // pred_check_branch
      %695 = sbr.rel (%p693) target = $region48
    $region47: #{unet_block.4} parent=5 // pred_region
      %s696 = ssub.s32 %s12, 2
      // Predicated region
      $region49: #{unet_block.4} parent=47 // pred_check
        %p697 = pneg %p148
      $region50: #{unet_block.4} parent=47 // pred_check_branch
        %699 = sbr.rel (%p697) target = $region52
      $region51: #{unet_block.4} parent=47 // pred_region
        %s700 = smul.u32 %s23, 2
        %s701 = sadd.s32 %s700, %s24
        %p702 = scmp.lt.s32.totalorder %s701, 3
        %s703 = scalar_select %p702, %s701, 3
        %s704 = smul.addr %s703, 8
        %s705 = scalar_lea.vmem %s4, %s704
      $region52: #{unet_block.4} parent=47 // pred_fallthru
        _
      // Predicated region
      $region53: #{unet_block.4} parent=47 // pred_check
        %p706 = pneg %p178
      $region54: #{unet_block.4} parent=47 // pred_check_branch
        %708 = sbr.rel (%p706) target = $region56
      $region55: #{unet_block.4} parent=47 // pred_region
        %s709 = smul.u32 %s23, 2
        %s710 = sadd.s32 %s709, %s24
        %p711 = scmp.lt.s32.totalorder %s710, 3
        %s712 = scalar_select %p711, %s710, 3
        %s713 = smul.addr %s712, 2
        %s714 = scalar_lea.vmem %s5, %s713
      $region56: #{unet_block.4} parent=47 // pred_fallthru
        _
    $region48: #{unet_block.4} parent=5 // pred_fallthru
      _
  $region6: #{unet_block.4} parent=0 // loop_footer
    %s16 = sadd.s32 1, %s12
  $region7: #{unet_block.4} parent=0 // loop_footer_branch
    %11 = sbr.rel target = $region3
  $region8: #{unet_block.4} parent=0 // loop_exit
    _

// kernel: unet_block.5
$region0: #{unet_block.5}
  #allocation0 [shape = 'u32[]', space=smem, size = 0x4, offset = 0x4, fixed_abs, tag = 'smem constant byte address 0x4 - core index']
  #allocation1 [shape = 'u32[144,128]{1,0:T(1,128)}', space=vmem, size = 0x12000, scoped, tag = 'internal scratch']
  %s0 = inlined_call_operand.vmem [shape: f32[32,128], index: 0, kind: input, shape index: {}]
  %s1 = inlined_call_operand.vmem [shape: f32[1,128], index: 1, kind: input, shape index: {}]
  %s2 = inlined_call_operand.vmem [shape: f32[1,128], index: 2, kind: input, shape index: {}]
  %s3 = inlined_call_operand.vmem [shape: f32[32,128], index: 3, kind: output, shape index: {}]
  %s4 = sld [smem:[#allocation0]]
  $region22: #{unet_block.5} parent=0
    _
  %s6 = ssub.s32 1, %s4
  %s7 = scalar_select 0, %s6, %s4
  // Predicated region
  $region2: #{unet_block.5} parent=0 // pred_check
    _
  $region3: #{unet_block.5} parent=0 // pred_check_branch
    %9 = sbr.rel (0) target = $region5
  $region4: #{unet_block.5} parent=0 // pred_region
    _
  $region5: #{unet_block.5} parent=0 // pred_fallthru
    _
  // Predicated region
  $region6: #{unet_block.5} parent=0 // pred_check
    _
  $region7: #{unet_block.5} parent=0 // pred_check_branch
    %11 = sbr.rel (0) target = $region9
  $region8: #{unet_block.5} parent=0 // pred_region
    _
  $region9: #{unet_block.5} parent=0 // pred_fallthru
    _
  // Predicated region
  $region10: #{unet_block.5} parent=0 // pred_check
    _
  $region11: #{unet_block.5} parent=0 // pred_check_branch
    %13 = sbr.rel (0) target = $region13
  $region12: #{unet_block.5} parent=0 // pred_region
    _
  $region13: #{unet_block.5} parent=0 // pred_fallthru
    _
  %v14 = vld [vmem:[%s0] sm:$0xff]
  %v15 = vld [vmem:[%s0 + $0x8] sm:$0xff]
  %v16 = vld [vmem:[%s0 + $0x10] sm:$0xff]
  %v17 = vld [vmem:[%s0 + $0x18] sm:$0xff]
  %v18 = vld [vmem:[%s1] sm:$0x1]
  %v20 = vlaneseq
  %v21 = vshrl.u32 %v20, 7
  %v22 = vsub.s32 0, %v21
  %v23 = vrot.slane %v18, %v22
  %v25 = vmul.f32 %v14, %v23
  %v26 = vmul.f32 %v15, %v23
  %v27 = vmul.f32 %v16, %v23
  %v28 = vmul.f32 %v17, %v23
  %v29 = vld [vmem:[%s2] sm:$0x1]
  %v31 = vlaneseq
  %v32 = vshrl.u32 %v31, 7
  %v33 = vsub.s32 0, %v32
  %v34 = vrot.slane %v29, %v33
  %v36 = vadd.f32 %v25, %v34
  %v37 = vadd.f32 %v26, %v34
  %v38 = vadd.f32 %v27, %v34
  %v39 = vadd.f32 %v28, %v34
  %vm40 = vcmp.gt.f32.partialorder %v36, 0.0
  %vm41 = vcmp.gt.f32.partialorder %v37, 0.0
  %vm42 = vcmp.gt.f32.partialorder %v38, 0.0
  %vm43 = vcmp.gt.f32.partialorder %v39, 0.0
  %v44 = vmul.f32 %v36, 0.1
  %v45 = vmul.f32 %v37, 0.1
  %v46 = vmul.f32 %v38, 0.1
  %v47 = vmul.f32 %v39, 0.1
  %v48 = vsel %vm40, %v36, %v44
  %v49 = vsel %vm41, %v37, %v45
  %v50 = vsel %vm42, %v38, %v46
  %v51 = vsel %vm43, %v39, %v47
  %52 = vst [vmem:[%s3] sm:$0xff] %v48
  %53 = vst [vmem:[%s3 + $0x8] sm:$0xff] %v49
  %54 = vst [vmem:[%s3 + $0x10] sm:$0xff] %v50
  %55 = vst [vmem:[%s3 + $0x18] sm:$0xff] %v51
  // Predicated region
  $region14: #{unet_block.5} parent=0 // pred_check
    _
  $region15: #{unet_block.5} parent=0 // pred_check_branch
    %57 = sbr.rel (0) target = $region17
  $region16: #{unet_block.5} parent=0 // pred_region
    _
  $region17: #{unet_block.5} parent=0 // pred_fallthru
    _
  // Predicated region
  $region18: #{unet_block.5} parent=0 // pred_check
    _
  $region19: #{unet_block.5} parent=0 // pred_check_branch
    %59 = sbr.rel (0) target = $region21
  $region20: #{unet_block.5} parent=0 // pred_region
    _
  $region21: #{unet_block.5} parent=0 // pred_fallthru
    _

</llo_original>
